<compile_context>
chip_gen: v6e
topology: v6e:2x2x1
jax: 0.10.0
libtpu: 0.0.40
codegen_flags: <defaults>
</compile_context>

<pallas_src>
import jax
import jax.numpy as jnp
from jax import lax
from jax.experimental import pallas as pl
from jax.experimental.pallas import tpu as pltpu


# ------------------------- banded weight construction ----------------------- #

def _banded_weights(w_hwio, W):
    """(3,3,Cs,Co) HWIO 3x3 kernel -> (3, W*Cs, W*Co) per-dy banded matrices.

    band[dy][xi*Cs+ci, xo*Co+co] = w[dy, xi-xo+1, ci, co] if |xi-xo| <= 1 else 0.
    The zero band implements SAME zero-padding along W for free.
    """
    KH, KW, Cs, Co = w_hwio.shape
    bands = []
    for dy in range(KH):
        b = jnp.zeros((W, Cs, W, Co), jnp.float32)
        for dxk in range(KW):
            # sel[xi, xo] = 1 iff xi == xo + (dxk - 1)
            sel = jnp.eye(W, k=-(dxk - 1), dtype=jnp.float32)
            b = b + sel[:, None, :, None] * w_hwio[dy, dxk][None, :, None, :]
        bands.append(b.reshape(W * Cs, W * Co))
    return jnp.stack(bands, axis=0)


def _skip_band(wskip, W):
    """(Cin, Cout) 1x1 skip conv -> (W*Cin, W*Cout) block-diagonal matrix."""
    Cin, Cout = wskip.shape
    eye = jnp.eye(W, dtype=jnp.float32)
    return (eye[:, None, :, None] * wskip[None, :, None, :]).reshape(W * Cin, W * Cout)


# ------------------------------ fused kernel ------------------------------- #

def _make_resblock_kernel(H, W, Cin, Cmid, Cout, has_skip_proj):
    WCin, WCmid, WCout = W * Cin, W * Cmid, W * Cout

    def _conv3x3(pad_ref, wb_ref, brow_ref):
        # Banded conv: 3 MXU dots (one per dy tap) over lane-dense rows,
        # f32 accumulation, bias row broadcast over H.
        acc = brow_ref[...]                                   # (1, W*Co) f32
        for dy in range(3):
            acc = acc + jnp.dot(pad_ref[pl.ds(dy, H), :], wb_ref[dy],
                                preferred_element_type=jnp.float32)
        return acc                                            # (H, W*Co) f32

    def kernel(*args):
        if has_skip_proj:
            (x_ref, w1_ref, b1_ref, w2_ref, b2_ref, w3_ref, b3_ref, ws_ref,
             o_ref, xpad, hpad) = args
        else:
            (x_ref, w1_ref, b1_ref, w2_ref, b2_ref, w3_ref, b3_ref,
             o_ref, xpad, hpad) = args
            ws_ref = None

        # Zero ONLY the 1-row top/bottom borders (interior is fully overwritten
        # below; W-direction padding lives in the zero band of the weights).
        # Done every grid step: scratch persists per-core, and with the
        # "parallel" axis on v7x only one core would see a step==0 guard.
        xpad[0:1, :] = jnp.zeros((1, WCin), xpad.dtype)
        xpad[H + 1:H + 2, :] = jnp.zeros((1, WCin), xpad.dtype)
        hpad[0:1, :] = jnp.zeros((1, WCmid), hpad.dtype)
        hpad[H + 1:H + 2, :] = jnp.zeros((1, WCmid), hpad.dtype)

        x = x_ref[0]                                          # (H, W*Cin) f32
        xpad[pl.ds(1, H), :] = x.astype(xpad.dtype)           # bf16 MXU operand

        h1 = jnp.maximum(_conv3x3(xpad, w1_ref, b1_ref), 0.0)     # (H, W*Cmid)
        hpad[pl.ds(1, H), :] = h1.astype(hpad.dtype)

        h2 = jnp.maximum(_conv3x3(hpad, w2_ref, b2_ref), 0.0)
        hpad[pl.ds(1, H), :] = h2.astype(hpad.dtype)          # reuse hpad for h2

        acc = _conv3x3(hpad, w3_ref, b3_ref)                  # (H, W*Cout) f32

        if has_skip_proj:
            # 1x1 projection fused into conv3's f32 accumulator (one more
            # banded dot, no separate add pass).
            acc = acc + jnp.dot(xpad[pl.ds(1, H), :], ws_ref[...],
                                preferred_element_type=jnp.float32)
        else:                                                 # Cin == Cout
            acc = acc + x

        # Lane-dense store: last dim = W*Cout (128 for the demo shapes).
        o_ref[0] = jnp.maximum(acc, 0.0).astype(o_ref.dtype)

    return kernel


# --------------------------------- wrapper ---------------------------------- #

def res_block_apply(x_nchw, params, *, mxu_dtype=jnp.bfloat16):
    """ResBlock forward.  x_nchw: (N, Cin, H, W) float32 -> (N, Cout, H, W)."""
    N, Cin, H, W = x_nchw.shape
    Cmid = params["w1"].shape[-1]
    Cout = params["w3"].shape[-1]

    # NCHW -> lane-dense rows (N, H, W*Cin); channel fastest within a row.
    x = jnp.transpose(x_nchw, (0, 2, 3, 1)).reshape(N, H, W * Cin)

    # Fold the 3x3 taps into per-dy banded matrices; biases become lane rows.
    w1b = _banded_weights(params["w1"], W).astype(mxu_dtype)   # (3, W*Cin,  W*Cmid)
    w2b = _banded_weights(params["w2"], W).astype(mxu_dtype)   # (3, W*Cmid, W*Cmid)
    w3b = _banded_weights(params["w3"], W).astype(mxu_dtype)   # (3, W*Cmid, W*Cout)
    b1r = jnp.tile(params["b1"], W).reshape(1, W * Cmid).astype(jnp.float32)
    b2r = jnp.tile(params["b2"], W).reshape(1, W * Cmid).astype(jnp.float32)
    b3r = jnp.tile(params["b3"], W).reshape(1, W * Cout).astype(jnp.float32)

    has_skip_proj = params["wskip"] is not None
    if not has_skip_proj:
        assert Cin == Cout, (Cin, Cout)

    inputs = [x, w1b, b1r, w2b, b2r, w3b, b3r]
    in_specs = [
        pl.BlockSpec((1, H, W * Cin), lambda n: (n, 0, 0)),
        pl.BlockSpec((3, W * Cin, W * Cmid), lambda n: (0, 0, 0)),
        pl.BlockSpec((1, W * Cmid), lambda n: (0, 0)),
        pl.BlockSpec((3, W * Cmid, W * Cmid), lambda n: (0, 0, 0)),
        pl.BlockSpec((1, W * Cmid), lambda n: (0, 0)),
        pl.BlockSpec((3, W * Cmid, W * Cout), lambda n: (0, 0, 0)),
        pl.BlockSpec((1, W * Cout), lambda n: (0, 0)),
    ]
    if has_skip_proj:
        inputs.append(_skip_band(params["wskip"], W).astype(mxu_dtype))
        in_specs.append(pl.BlockSpec((W * Cin, W * Cout), lambda n: (0, 0)))

    kernel = _make_resblock_kernel(H, W, Cin, Cmid, Cout, has_skip_proj)

    flops = 2 * N * H * W * 9 * (Cin * Cmid + Cmid * Cmid + Cmid * Cout)
    if has_skip_proj:
        flops += 2 * N * H * W * Cin * Cout
    bytes_accessed = sum(int(a.size) * a.dtype.itemsize for a in inputs)
    bytes_accessed += int(N * H * W * Cout) * x.dtype.itemsize

    out = pl.pallas_call(
        kernel,
        out_shape=jax.ShapeDtypeStruct((N, H, W * Cout), x.dtype),
        grid_spec=pltpu.PrefetchScalarGridSpec(
            num_scalar_prefetch=0,
            grid=(N,),                      # 1 image / step; N=2 -> both v7x TCs busy
            in_specs=in_specs,
            out_specs=pl.BlockSpec((1, H, W * Cout), lambda n: (n, 0, 0)),
            scratch_shapes=[
                pltpu.VMEM((H + 2, W * Cin), mxu_dtype),    # xpad (H-padded rows)
                pltpu.VMEM((H + 2, W * Cmid), mxu_dtype),   # hpad, reused for h1/h2
            ],
        ),
        compiler_params=pltpu.CompilerParams(
            dimension_semantics=("parallel",),
            vmem_limit_bytes=32 * 1024 * 1024,
        ),
        cost_estimate=pl.CostEstimate(
            flops=flops, transcendentals=0, bytes_accessed=bytes_accessed),
    )(*inputs)

    out = out.reshape(N, H, W, Cout)
    return jnp.transpose(out, (0, 3, 1, 2))                   # NHWC -> NCHW


# --------------------------- parameter creation ----------------------------- #

def init_res_block_params(key, n_in, n_out):
    ks = jax.random.split(key, 7)

    def uinit(k, shape, fan_in):
        bound = 1.0 / jnp.sqrt(float(fan_in))
        return jax.random.uniform(k, shape, jnp.float32, -bound, bound)

    params = {
        # HWIO weights (KH, KW, Cin, Cout)
        "w1": uinit(ks[0], (3, 3, n_in, n_out), 9 * n_in),
        "b1": uinit(ks[1], (n_out,), 9 * n_in),
        "w2": uinit(ks[2], (3, 3, n_out, n_out), 9 * n_out),
        "b2": uinit(ks[3], (n_out,), 9 * n_out),
        "w3": uinit(ks[4], (3, 3, n_out, n_out), 9 * n_out),
        "b3": uinit(ks[5], (n_out,), 9 * n_out),
        # 1x1 skip conv without bias (only used when n_in != n_out)
        "wskip": uinit(ks[6], (n_in, n_out), n_in) if n_in != n_out else None,
    }
    return params


# ------------------------------- reference ---------------------------------- #

def res_block_reference(x_nchw, params):
    """Pure-JAX reference (lax.conv) matching PyTorch ResBlock semantics."""
    x = jnp.transpose(x_nchw, (0, 2, 3, 1))
    dn = ("NHWC", "HWIO", "NHWC")

    def conv3(h, w, b):
        y = lax.conv_general_dilated(h, w, (1, 1), ((1, 1), (1, 1)),
                                     dimension_numbers=dn)
        return y + b

    h = jax.nn.relu(conv3(x, params["w1"], params["b1"]))
    h = jax.nn.relu(conv3(h, params["w2"], params["b2"]))
    h = conv3(h, params["w3"], params["b3"])
    if params["wskip"] is None:
        skip = x
    else:
        skip = lax.conv_general_dilated(x, params["wskip"][None, None],
                                        (1, 1), ((0, 0), (0, 0)),
                                        dimension_numbers=dn)
    out = jax.nn.relu(h + skip)
    return jnp.transpose(out, (0, 3, 1, 2))


# ---------------------------------- main ------------------------------------ #

if __name__ == "__main__":
    key = jax.random.PRNGKey(0)
    k_x, k_p, k_x2, k_p2 = jax.random.split(key, 4)

    # bf16 MXU operands (f32 accumulation) -> relaxed tolerance vs f32 lax.conv.
    ATOL = RTOL = 5e-2

    # Case 1: n_in != n_out -> 1x1 projection skip (fused into conv3's accum).
    N, n_in, n_out, H, W = 2, 4, 8, 16, 16
    x = jax.random.normal(k_x, (N, n_in, H, W), jnp.float32)   # NCHW like torch
    params = init_res_block_params(k_p, n_in, n_out)

    out = jax.block_until_ready(res_block_apply(x, params))
    ref = jax.block_until_ready(res_block_reference(x, params))
    assert out.shape == (N, n_out, H, W), out.shape
    assert jnp.allclose(out, ref, atol=ATOL, rtol=RTOL), (
        float(jnp.max(jnp.abs(out - ref))))

    # Case 2: n_in == n_out -> identity skip (plain in-kernel f32 add).
    n_io = 8
    x2 = jax.random.normal(k_x2, (N, n_io, H, W), jnp.float32)
    params2 = init_res_block_params(k_p2, n_io, n_io)

    out2 = jax.block_until_ready(res_block_apply(x2, params2))
    ref2 = jax.block_until_ready(res_block_reference(x2, params2))
    assert out2.shape == (N, n_io, H, W), out2.shape
    assert jnp.allclose(out2, ref2, atol=ATOL, rtol=RTOL), (
        float(jnp.max(jnp.abs(out2 - ref2))))

    print("KERNEL_OK")
</pallas_src>

<mosaic_0001>
module attributes {stable_mosaic.version = 11 : i64} {
  func.func @kernel(%arg0: i32, %arg1: memref<1x16x64xf32, #tpu.memory_space<vmem>>, %arg2: memref<3x64x128xbf16, #tpu.memory_space<vmem>>, %arg3: memref<1x128xf32, #tpu.memory_space<vmem>>, %arg4: memref<3x128x128xbf16, #tpu.memory_space<vmem>>, %arg5: memref<1x128xf32, #tpu.memory_space<vmem>>, %arg6: memref<3x128x128xbf16, #tpu.memory_space<vmem>>, %arg7: memref<1x128xf32, #tpu.memory_space<vmem>>, %arg8: memref<64x128xbf16, #tpu.memory_space<vmem>>, %arg9: memref<1x16x128xf32, #tpu.memory_space<vmem>>, %arg10: memref<18x64xbf16, #tpu.memory_space<vmem>>, %arg11: memref<18x128xbf16, #tpu.memory_space<vmem>>) attributes {dimension_semantics = [#tpu.dimension_semantics<parallel>], iteration_bounds = array<i64: 2>, scalar_prefetch = 0 : i64, scratch_operands = 2 : i64, tpu.core_type = #tpu.core_type<tc>, window_params = [{transform_indices = @transform_0, window_bounds = array<i64: 1, 16, 64>}, {pipeline_mode = #tpu.pipeline_mode<synchronous>, transform_indices = @transform_1, window_bounds = array<i64: 3, 64, 128>}, {pipeline_mode = #tpu.pipeline_mode<synchronous>, transform_indices = @transform_2, window_bounds = array<i64: 1, 128>}, {pipeline_mode = #tpu.pipeline_mode<synchronous>, transform_indices = @transform_3, window_bounds = array<i64: 3, 128, 128>}, {pipeline_mode = #tpu.pipeline_mode<synchronous>, transform_indices = @transform_4, window_bounds = array<i64: 1, 128>}, {pipeline_mode = #tpu.pipeline_mode<synchronous>, transform_indices = @transform_5, window_bounds = array<i64: 3, 128, 128>}, {pipeline_mode = #tpu.pipeline_mode<synchronous>, transform_indices = @transform_6, window_bounds = array<i64: 1, 128>}, {pipeline_mode = #tpu.pipeline_mode<synchronous>, transform_indices = @transform_7, window_bounds = array<i64: 64, 128>}, {transform_indices = @transform_8, window_bounds = array<i64: 1, 16, 128>}]} {
    %cst = arith.constant 0.000000e+00 : bf16
    %0 = vector.broadcast %cst : bf16 to vector<1x64xbf16>
    %c0 = arith.constant 0 : index
    %c0_0 = arith.constant 0 : index
    %1 = vector.load %arg10[%c0, %c0_0] : memref<18x64xbf16, #tpu.memory_space<vmem>>, vector<1x64xbf16>
    tpu.vector_store %arg10[%c0, %c0_0], %0 {strides = array<i32>} : memref<18x64xbf16, #tpu.memory_space<vmem>>, vector<1x64xbf16>,
    %cst_1 = arith.constant 0.000000e+00 : bf16
    %2 = vector.broadcast %cst_1 : bf16 to vector<1x64xbf16>
    %c17 = arith.constant 17 : index
    %c0_2 = arith.constant 0 : index
    %3 = vector.load %arg10[%c17, %c0_2] : memref<18x64xbf16, #tpu.memory_space<vmem>>, vector<1x64xbf16>
    tpu.vector_store %arg10[%c17, %c0_2], %2 {strides = array<i32>} : memref<18x64xbf16, #tpu.memory_space<vmem>>, vector<1x64xbf16>,
    %cst_3 = arith.constant 0.000000e+00 : bf16
    %4 = vector.broadcast %cst_3 : bf16 to vector<1x128xbf16>
    %c0_4 = arith.constant 0 : index
    %c0_5 = arith.constant 0 : index
    %5 = vector.load %arg11[%c0_4, %c0_5] : memref<18x128xbf16, #tpu.memory_space<vmem>>, vector<1x128xbf16>
    tpu.vector_store %arg11[%c0_4, %c0_5], %4 {strides = array<i32>} : memref<18x128xbf16, #tpu.memory_space<vmem>>, vector<1x128xbf16>,
    %cst_6 = arith.constant 0.000000e+00 : bf16
    %6 = vector.broadcast %cst_6 : bf16 to vector<1x128xbf16>
    %c17_7 = arith.constant 17 : index
    %c0_8 = arith.constant 0 : index
    %7 = vector.load %arg11[%c17_7, %c0_8] : memref<18x128xbf16, #tpu.memory_space<vmem>>, vector<1x128xbf16>
    tpu.vector_store %arg11[%c17_7, %c0_8], %6 {strides = array<i32>} : memref<18x128xbf16, #tpu.memory_space<vmem>>, vector<1x128xbf16>,
    %c0_9 = arith.constant 0 : index
    %c0_10 = arith.constant 0 : index
    %c0_11 = arith.constant 0 : index
    %8 = vector.load %arg1[%c0_9, %c0_10, %c0_11] : memref<1x16x64xf32, #tpu.memory_space<vmem>>, vector<1x16x64xf32>
    %9 = vector.shape_cast %8 : vector<1x16x64xf32> to vector<16x64xf32>
    %10 = arith.truncf %9 : vector<16x64xf32> to vector<16x64xbf16>
    %c1 = arith.constant 1 : index
    %c0_12 = arith.constant 0 : index
    %11 = vector.load %arg10[%c1, %c0_12] : memref<18x64xbf16, #tpu.memory_space<vmem>>, vector<16x64xbf16>
    tpu.vector_store %arg10[%c1, %c0_12], %10 {strides = array<i32>} : memref<18x64xbf16, #tpu.memory_space<vmem>>, vector<16x64xbf16>,
    %c0_13 = arith.constant 0 : index
    %c0_14 = arith.constant 0 : index
    %12 = vector.load %arg3[%c0_13, %c0_14] : memref<1x128xf32, #tpu.memory_space<vmem>>, vector<1x128xf32>
    %c0_15 = arith.constant 0 : index
    %c0_16 = arith.constant 0 : index
    %13 = vector.load %arg10[%c0_15, %c0_16] : memref<18x64xbf16, #tpu.memory_space<vmem>>, vector<16x64xbf16>
    %c0_17 = arith.constant 0 : index
    %c0_18 = arith.constant 0 : index
    %c0_19 = arith.constant 0 : index
    %14 = vector.load %arg2[%c0_17, %c0_18, %c0_19] : memref<3x64x128xbf16, #tpu.memory_space<vmem>>, vector<1x64x128xbf16>
    %15 = vector.shape_cast %14 : vector<1x64x128xbf16> to vector<64x128xbf16>
    %cst_20 = arith.constant dense<0.000000e+00> : vector<16x128xf32>
    %16 = tpu.matmul %13, %15, %cst_20 {dimension_numbers = #tpu.dot_dimension_numbers<[1], [0], [0], [1], [0, 0, 1, 1], [], []>} : vector<16x64xbf16>, vector<64x128xbf16>, vector<16x128xf32> -> vector<16x128xf32>
    %17 = vector.broadcast %12 : vector<1x128xf32> to vector<16x128xf32>
    %18 = arith.addf %17, %16 : vector<16x128xf32>
    %c1_21 = arith.constant 1 : index
    %c0_22 = arith.constant 0 : index
    %19 = vector.load %arg10[%c1_21, %c0_22] : memref<18x64xbf16, #tpu.memory_space<vmem>>, vector<16x64xbf16>
    %c1_23 = arith.constant 1 : index
    %c0_24 = arith.constant 0 : index
    %c0_25 = arith.constant 0 : index
    %20 = vector.load %arg2[%c1_23, %c0_24, %c0_25] : memref<3x64x128xbf16, #tpu.memory_space<vmem>>, vector<1x64x128xbf16>
    %21 = vector.shape_cast %20 : vector<1x64x128xbf16> to vector<64x128xbf16>
    %cst_26 = arith.constant dense<0.000000e+00> : vector<16x128xf32>
    %22 = tpu.matmul %19, %21, %cst_26 {dimension_numbers = #tpu.dot_dimension_numbers<[1], [0], [0], [1], [0, 0, 1, 1], [], []>} : vector<16x64xbf16>, vector<64x128xbf16>, vector<16x128xf32> -> vector<16x128xf32>
    %23 = arith.addf %18, %22 : vector<16x128xf32>
    %c2 = arith.constant 2 : index
    %c0_27 = arith.constant 0 : index
    %24 = vector.load %arg10[%c2, %c0_27] : memref<18x64xbf16, #tpu.memory_space<vmem>>, vector<16x64xbf16>
    %c2_28 = arith.constant 2 : index
    %c0_29 = arith.constant 0 : index
    %c0_30 = arith.constant 0 : index
    %25 = vector.load %arg2[%c2_28, %c0_29, %c0_30] : memref<3x64x128xbf16, #tpu.memory_space<vmem>>, vector<1x64x128xbf16>
    %26 = vector.shape_cast %25 : vector<1x64x128xbf16> to vector<64x128xbf16>
    %cst_31 = arith.constant dense<0.000000e+00> : vector<16x128xf32>
    %27 = tpu.matmul %24, %26, %cst_31 {dimension_numbers = #tpu.dot_dimension_numbers<[1], [0], [0], [1], [0, 0, 1, 1], [], []>} : vector<16x64xbf16>, vector<64x128xbf16>, vector<16x128xf32> -> vector<16x128xf32>
    %28 = arith.addf %23, %27 : vector<16x128xf32>
    %cst_32 = arith.constant 0.000000e+00 : f32
    %29 = vector.broadcast %cst_32 : f32 to vector<16x128xf32>
    %30 = arith.maximumf %28, %29 : vector<16x128xf32>
    %31 = arith.truncf %30 : vector<16x128xf32> to vector<16x128xbf16>
    %c1_33 = arith.constant 1 : index
    %c0_34 = arith.constant 0 : index
    %32 = vector.load %arg11[%c1_33, %c0_34] : memref<18x128xbf16, #tpu.memory_space<vmem>>, vector<16x128xbf16>
    tpu.vector_store %arg11[%c1_33, %c0_34], %31 {strides = array<i32>} : memref<18x128xbf16, #tpu.memory_space<vmem>>, vector<16x128xbf16>,
    %c0_35 = arith.constant 0 : index
    %c0_36 = arith.constant 0 : index
    %33 = vector.load %arg5[%c0_35, %c0_36] : memref<1x128xf32, #tpu.memory_space<vmem>>, vector<1x128xf32>
    %c0_37 = arith.constant 0 : index
    %c0_38 = arith.constant 0 : index
    %34 = vector.load %arg11[%c0_37, %c0_38] : memref<18x128xbf16, #tpu.memory_space<vmem>>, vector<16x128xbf16>
    %c0_39 = arith.constant 0 : index
    %c0_40 = arith.constant 0 : index
    %c0_41 = arith.constant 0 : index
    %35 = vector.load %arg4[%c0_39, %c0_40, %c0_41] : memref<3x128x128xbf16, #tpu.memory_space<vmem>>, vector<1x128x128xbf16>
    %36 = vector.shape_cast %35 : vector<1x128x128xbf16> to vector<128x128xbf16>
    %cst_42 = arith.constant dense<0.000000e+00> : vector<16x128xf32>
    %37 = tpu.matmul %34, %36, %cst_42 {dimension_numbers = #tpu.dot_dimension_numbers<[1], [0], [0], [1], [0, 0, 1, 1], [], []>} : vector<16x128xbf16>, vector<128x128xbf16>, vector<16x128xf32> -> vector<16x128xf32>
    %38 = vector.broadcast %33 : vector<1x128xf32> to vector<16x128xf32>
    %39 = arith.addf %38, %37 : vector<16x128xf32>
    %c1_43 = arith.constant 1 : index
    %c0_44 = arith.constant 0 : index
    %40 = vector.load %arg11[%c1_43, %c0_44] : memref<18x128xbf16, #tpu.memory_space<vmem>>, vector<16x128xbf16>
    %c1_45 = arith.constant 1 : index
    %c0_46 = arith.constant 0 : index
    %c0_47 = arith.constant 0 : index
    %41 = vector.load %arg4[%c1_45, %c0_46, %c0_47] : memref<3x128x128xbf16, #tpu.memory_space<vmem>>, vector<1x128x128xbf16>
    %42 = vector.shape_cast %41 : vector<1x128x128xbf16> to vector<128x128xbf16>
    %cst_48 = arith.constant dense<0.000000e+00> : vector<16x128xf32>
    %43 = tpu.matmul %40, %42, %cst_48 {dimension_numbers = #tpu.dot_dimension_numbers<[1], [0], [0], [1], [0, 0, 1, 1], [], []>} : vector<16x128xbf16>, vector<128x128xbf16>, vector<16x128xf32> -> vector<16x128xf32>
    %44 = arith.addf %39, %43 : vector<16x128xf32>
    %c2_49 = arith.constant 2 : index
    %c0_50 = arith.constant 0 : index
    %45 = vector.load %arg11[%c2_49, %c0_50] : memref<18x128xbf16, #tpu.memory_space<vmem>>, vector<16x128xbf16>
    %c2_51 = arith.constant 2 : index
    %c0_52 = arith.constant 0 : index
    %c0_53 = arith.constant 0 : index
    %46 = vector.load %arg4[%c2_51, %c0_52, %c0_53] : memref<3x128x128xbf16, #tpu.memory_space<vmem>>, vector<1x128x128xbf16>
    %47 = vector.shape_cast %46 : vector<1x128x128xbf16> to vector<128x128xbf16>
    %cst_54 = arith.constant dense<0.000000e+00> : vector<16x128xf32>
    %48 = tpu.matmul %45, %47, %cst_54 {dimension_numbers = #tpu.dot_dimension_numbers<[1], [0], [0], [1], [0, 0, 1, 1], [], []>} : vector<16x128xbf16>, vector<128x128xbf16>, vector<16x128xf32> -> vector<16x128xf32>
    %49 = arith.addf %44, %48 : vector<16x128xf32>
    %cst_55 = arith.constant 0.000000e+00 : f32
    %50 = vector.broadcast %cst_55 : f32 to vector<16x128xf32>
    %51 = arith.maximumf %49, %50 : vector<16x128xf32>
    %52 = arith.truncf %51 : vector<16x128xf32> to vector<16x128xbf16>
    %c1_56 = arith.constant 1 : index
    %c0_57 = arith.constant 0 : index
    %53 = vector.load %arg11[%c1_56, %c0_57] : memref<18x128xbf16, #tpu.memory_space<vmem>>, vector<16x128xbf16>
    tpu.vector_store %arg11[%c1_56, %c0_57], %52 {strides = array<i32>} : memref<18x128xbf16, #tpu.memory_space<vmem>>, vector<16x128xbf16>,
    %c0_58 = arith.constant 0 : index
    %c0_59 = arith.constant 0 : index
    %54 = vector.load %arg7[%c0_58, %c0_59] : memref<1x128xf32, #tpu.memory_space<vmem>>, vector<1x128xf32>
    %c0_60 = arith.constant 0 : index
    %c0_61 = arith.constant 0 : index
    %55 = vector.load %arg11[%c0_60, %c0_61] : memref<18x128xbf16, #tpu.memory_space<vmem>>, vector<16x128xbf16>
    %c0_62 = arith.constant 0 : index
    %c0_63 = arith.constant 0 : index
    %c0_64 = arith.constant 0 : index
    %56 = vector.load %arg6[%c0_62, %c0_63, %c0_64] : memref<3x128x128xbf16, #tpu.memory_space<vmem>>, vector<1x128x128xbf16>
    %57 = vector.shape_cast %56 : vector<1x128x128xbf16> to vector<128x128xbf16>
    %cst_65 = arith.constant dense<0.000000e+00> : vector<16x128xf32>
    %58 = tpu.matmul %55, %57, %cst_65 {dimension_numbers = #tpu.dot_dimension_numbers<[1], [0], [0], [1], [0, 0, 1, 1], [], []>} : vector<16x128xbf16>, vector<128x128xbf16>, vector<16x128xf32> -> vector<16x128xf32>
    %59 = vector.broadcast %54 : vector<1x128xf32> to vector<16x128xf32>
    %60 = arith.addf %59, %58 : vector<16x128xf32>
    %c1_66 = arith.constant 1 : index
    %c0_67 = arith.constant 0 : index
    %61 = vector.load %arg11[%c1_66, %c0_67] : memref<18x128xbf16, #tpu.memory_space<vmem>>, vector<16x128xbf16>
    %c1_68 = arith.constant 1 : index
    %c0_69 = arith.constant 0 : index
    %c0_70 = arith.constant 0 : index
    %62 = vector.load %arg6[%c1_68, %c0_69, %c0_70] : memref<3x128x128xbf16, #tpu.memory_space<vmem>>, vector<1x128x128xbf16>
    %63 = vector.shape_cast %62 : vector<1x128x128xbf16> to vector<128x128xbf16>
    %cst_71 = arith.constant dense<0.000000e+00> : vector<16x128xf32>
    %64 = tpu.matmul %61, %63, %cst_71 {dimension_numbers = #tpu.dot_dimension_numbers<[1], [0], [0], [1], [0, 0, 1, 1], [], []>} : vector<16x128xbf16>, vector<128x128xbf16>, vector<16x128xf32> -> vector<16x128xf32>
    %65 = arith.addf %60, %64 : vector<16x128xf32>
    %c2_72 = arith.constant 2 : index
    %c0_73 = arith.constant 0 : index
    %66 = vector.load %arg11[%c2_72, %c0_73] : memref<18x128xbf16, #tpu.memory_space<vmem>>, vector<16x128xbf16>
    %c2_74 = arith.constant 2 : index
    %c0_75 = arith.constant 0 : index
    %c0_76 = arith.constant 0 : index
    %67 = vector.load %arg6[%c2_74, %c0_75, %c0_76] : memref<3x128x128xbf16, #tpu.memory_space<vmem>>, vector<1x128x128xbf16>
    %68 = vector.shape_cast %67 : vector<1x128x128xbf16> to vector<128x128xbf16>
    %cst_77 = arith.constant dense<0.000000e+00> : vector<16x128xf32>
    %69 = tpu.matmul %66, %68, %cst_77 {dimension_numbers = #tpu.dot_dimension_numbers<[1], [0], [0], [1], [0, 0, 1, 1], [], []>} : vector<16x128xbf16>, vector<128x128xbf16>, vector<16x128xf32> -> vector<16x128xf32>
    %70 = arith.addf %65, %69 : vector<16x128xf32>
    %c1_78 = arith.constant 1 : index
    %c0_79 = arith.constant 0 : index
    %71 = vector.load %arg10[%c1_78, %c0_79] : memref<18x64xbf16, #tpu.memory_space<vmem>>, vector<16x64xbf16>
    %c0_80 = arith.constant 0 : index
    %c0_81 = arith.constant 0 : index
    %72 = vector.load %arg8[%c0_80, %c0_81] : memref<64x128xbf16, #tpu.memory_space<vmem>>, vector<64x128xbf16>
    %cst_82 = arith.constant dense<0.000000e+00> : vector<16x128xf32>
    %73 = tpu.matmul %71, %72, %cst_82 {dimension_numbers = #tpu.dot_dimension_numbers<[1], [0], [0], [1], [0, 0, 1, 1], [], []>} : vector<16x64xbf16>, vector<64x128xbf16>, vector<16x128xf32> -> vector<16x128xf32>
    %74 = arith.addf %70, %73 : vector<16x128xf32>
    %cst_83 = arith.constant 0.000000e+00 : f32
    %75 = vector.broadcast %cst_83 : f32 to vector<16x128xf32>
    %76 = arith.maximumf %74, %75 : vector<16x128xf32>
    %c0_84 = arith.constant 0 : index
    %c0_85 = arith.constant 0 : index
    %c0_86 = arith.constant 0 : index
    %77 = vector.load %arg9[%c0_84, %c0_85, %c0_86] : memref<1x16x128xf32, #tpu.memory_space<vmem>>, vector<1x16x128xf32>
    %78 = vector.shape_cast %77 : vector<1x16x128xf32> to vector<16x128xf32>
    %79 = vector.shape_cast %76 : vector<16x128xf32> to vector<1x16x128xf32>
    tpu.vector_store %arg9[%c0_84, %c0_85, %c0_86], %79 {strides = array<i32>} : memref<1x16x128xf32, #tpu.memory_space<vmem>>, vector<1x16x128xf32>,
    return
  }
  func.func @transform_0(%arg0: i32) -> (i32, i32, i32) {
    %c0_i32 = arith.constant 0 : i32
    %c0_i32_0 = arith.constant 0 : i32
    %c0_i32_1 = arith.constant 0 : i32
    return %arg0, %c0_i32, %c0_i32_0 : i32, i32, i32
  }
  func.func @transform_1(%arg0: i32) -> (i32, i32, i32) {
    %c0_i32 = arith.constant 0 : i32
    %c0_i32_0 = arith.constant 0 : i32
    %c0_i32_1 = arith.constant 0 : i32
    %c0_i32_2 = arith.constant 0 : i32
    return %c0_i32, %c0_i32_0, %c0_i32_1 : i32, i32, i32
  }
  func.func @transform_2(%arg0: i32) -> (i32, i32) {
    %c0_i32 = arith.constant 0 : i32
    %c0_i32_0 = arith.constant 0 : i32
    %c0_i32_1 = arith.constant 0 : i32
    return %c0_i32, %c0_i32_0 : i32, i32
  }
  func.func @transform_3(%arg0: i32) -> (i32, i32, i32) {
    %c0_i32 = arith.constant 0 : i32
    %c0_i32_0 = arith.constant 0 : i32
    %c0_i32_1 = arith.constant 0 : i32
    %c0_i32_2 = arith.constant 0 : i32
    return %c0_i32, %c0_i32_0, %c0_i32_1 : i32, i32, i32
  }
  func.func @transform_4(%arg0: i32) -> (i32, i32) {
    %c0_i32 = arith.constant 0 : i32
    %c0_i32_0 = arith.constant 0 : i32
    %c0_i32_1 = arith.constant 0 : i32
    return %c0_i32, %c0_i32_0 : i32, i32
  }
  func.func @transform_5(%arg0: i32) -> (i32, i32, i32) {
    %c0_i32 = arith.constant 0 : i32
    %c0_i32_0 = arith.constant 0 : i32
    %c0_i32_1 = arith.constant 0 : i32
    %c0_i32_2 = arith.constant 0 : i32
    return %c0_i32, %c0_i32_0, %c0_i32_1 : i32, i32, i32
  }
  func.func @transform_6(%arg0: i32) -> (i32, i32) {
    %c0_i32 = arith.constant 0 : i32
    %c0_i32_0 = arith.constant 0 : i32
    %c0_i32_1 = arith.constant 0 : i32
    return %c0_i32, %c0_i32_0 : i32, i32
  }
  func.func @transform_7(%arg0: i32) -> (i32, i32) {
    %c0_i32 = arith.constant 0 : i32
    %c0_i32_0 = arith.constant 0 : i32
    %c0_i32_1 = arith.constant 0 : i32
    return %c0_i32, %c0_i32_0 : i32, i32
  }
  func.func @transform_8(%arg0: i32) -> (i32, i32, i32) {
    %c0_i32 = arith.constant 0 : i32
    %c0_i32_0 = arith.constant 0 : i32
    %c0_i32_1 = arith.constant 0 : i32
    return %arg0, %c0_i32, %c0_i32_0 : i32, i32, i32
  }
}

</mosaic_0001>

<llo_original>
// kernel: tpu_custom_call.1
$region0: #{tpu_custom_call.1}
  #allocation0 [shape = 'u32[]', space=smem, size = 0x4, offset = 0x4, fixed_abs, tag = 'smem constant byte address 0x4 - core index']
  #allocation1 [shape = 'u32[144,128]{1,0:T(1,128)}', space=vmem, size = 0x12000, scoped, tag = 'internal scratch']
  #allocation2 [shape = 'bf16[18,64]{1,0:T(8,128)(2,1)}', space=vmem, size = 0x1800, scoped, tag = 'scratch operand']
  #allocation3 [shape = 'bf16[18,128]{1,0:T(8,128)(2,1)}', space=vmem, size = 0x1800, scoped, tag = 'scratch operand']
  %s0 = inlined_call_operand.hbm [shape: f32[2,16,64], index: 0, kind: input, shape index: {}]
  %s1 = inlined_call_operand.hbm [shape: bf16[3,64,128], index: 1, kind: input, shape index: {}]
  %s2 = inlined_call_operand.vmem [shape: f32[1,128], index: 2, kind: input, shape index: {}]
  %s3 = inlined_call_operand.hbm [shape: bf16[3,128,128], index: 3, kind: input, shape index: {}]
  %s4 = inlined_call_operand.vmem [shape: f32[1,128], index: 4, kind: input, shape index: {}]
  %s5 = inlined_call_operand.hbm [shape: bf16[3,128,128], index: 5, kind: input, shape index: {}]
  %s6 = inlined_call_operand.vmem [shape: f32[1,128], index: 6, kind: input, shape index: {}]
  %s7 = inlined_call_operand.hbm [shape: bf16[64,128], index: 7, kind: input, shape index: {}]
  %s8 = inlined_call_operand.hbm [shape: f32[2,16,128], index: 8, kind: output, shape index: {}]
  %s9 = sld [smem:[#allocation0]]
  $region85: #{tpu_custom_call.1} parent=0
    _
  %s11 = ssub.s32 1, %s9
  %s12 = scalar_select 0, %s11, %s9
  $region1: #{tpu_custom_call.1} parent=0
    #allocation4 [shape = 'u8[16384]{0}', space=vmem, size = 0x4000, scoped, tag = 'input window, operand 0']
    #allocation5 [shape = 's32[2]{0}', space=sflag, size = 0x8, scoped, tag = 'scoped memory for tpu_custom_call.1']
    #allocation6 [shape = 's32[2]{0}', space=sflag, size = 0x8, scoped, tag = 'scoped memory for tpu_custom_call.1']
    #allocation7 [shape = 'u8[49152]{0}', space=vmem, size = 0xc000, scoped, tag = 'input window, operand 1, single buffered']
    #allocation8 [shape = 's32[1]{0}', space=sflag, size = 0x4, scoped, tag = 'scoped memory for tpu_custom_call.1']
    #allocation9 [shape = 'u8[98304]{0}', space=vmem, size = 0x18000, scoped, tag = 'input window, operand 3, single buffered']
    #allocation10 [shape = 'u8[98304]{0}', space=vmem, size = 0x18000, scoped, tag = 'input window, operand 5, single buffered']
    #allocation11 [shape = 's32[1]{0}', space=sflag, size = 0x4, scoped, tag = 'scoped memory for tpu_custom_call.1']
    #allocation12 [shape = 'u8[16384]{0}', space=vmem, size = 0x4000, scoped, tag = 'input window, operand 7, single buffered']
    #allocation13 [shape = 'u8[16384]{0}', space=vmem, size = 0x4000, scoped, tag = 'output window, operand 0']
    %13 = vsyncpa [#allocation5], 0
    %s14 = scalar_lea.sflag [#allocation5], 1
    %15 = vsyncpa %s14, 0
    %16 = vsyncpa [#allocation8], 0
    %17 = vsyncpa [#allocation11], 0
    %18 = vsyncpa [#allocation6], 0
    %s19 = scalar_lea.sflag [#allocation6], 1
    %20 = vsyncpa %s19, 0
    loop: start=0, step=1, limit=4
    $region2: #{tpu_custom_call.1} parent=1 // loop_pre_header
      _
    $region3: #{tpu_custom_call.1} parent=1 // loop_header
      %s22 = sphi 0, %s26
      %p23 = scmp.ge.s32.totalorder %s22, 4
      %s32 = sphi 0, %s34
      %s35 = sphi 0, %s32
      %s36 = sphi 0, %s35
      %s52 = sphi 0, %s36
      %s56 = sphi 0, %s56
      %s58 = sphi 0, %s56
      %s59 = sphi 0, %s58
      %s73 = sphi 0, %s59
      %s77 = sphi 0, %s77
      %s79 = sphi 0, %s77
      %s80 = sphi 0, %s79
      %s94 = sphi 0, %s80
      %s98 = sphi 0, %s98
      %s100 = sphi 0, %s98
      %s101 = sphi 0, %s100
      %s115 = sphi 0, %s101
      %s119 = sphi 0, %s119
      %s121 = sphi 0, %s119
      %s122 = sphi 0, %s121
      %s136 = sphi 0, %s122
      %s140 = sphi 0, %s140
      %s142 = sphi 0, %s140
      %s143 = sphi 0, %s142
      %s157 = sphi 0, %s143
      %s161 = sphi 0, %s161
      %s163 = sphi 0, %s161
      %s164 = sphi 0, %s163
      %s178 = sphi 0, %s164
      %s182 = sphi 0, %s182
      %s184 = sphi 0, %s182
      %s185 = sphi 0, %s184
      %s199 = sphi 0, %s185
      %s205 = sphi 0, %s207
      %s208 = sphi 0, %s205
      %s209 = sphi 0, %s208
      %s225 = sphi 0, %s209
    $region4: #{tpu_custom_call.1} parent=1 // loop_header_branch
      %25 = sbr.rel (%p23) target = $region8
    $region5: #{tpu_custom_call.1} parent=1 // loop_body
      %s27 = ssub.s32 %s22, 1
      %s28 = ssub.s32 %s22, 2
      %s29 = sadd.s32 %s22, 1
      %s30 = ssub.s32 %s22, %s29
      %p31 = scmp.eq.s32.totalorder %s30, 0
      %s33 = sadd.s32 %s32, 1
      %s34 = scalar_select %p31, %s32, %s33
      %p37 = pneg %p31
      %p38 = scmp.eq.s32.totalorder %s22, 1
      %p39 = por %p37, %p38
      %p40 = scmp.ne.s32.totalorder %s32, %s35
      %p41 = scmp.eq.s32.totalorder %s22, 0
      %p42 = por %p40, %p41
      %p43 = scmp.ne.s32.totalorder %s32, %s35
      %p44 = scmp.eq.s32.totalorder %s27, 1
      %p45 = por %p43, %p44
      %p46 = scmp.ne.s32.totalorder %s35, %s36
      %p47 = scmp.eq.s32.totalorder %s27, 0
      %p48 = por %p46, %p47
      %p49 = scmp.ne.s32.totalorder %s35, %s36
      %p50 = scmp.eq.s32.totalorder %s28, 1
      %p51 = por %p49, %p50
      %p53 = scmp.ne.s32.totalorder %s36, %s52
      %p54 = scmp.eq.s32.totalorder %s28, 0
      %p55 = por %p53, %p54
      %s57 = sadd.s32 %s56, 1
      %p60 = scmp.eq.s32.totalorder %s22, 1
      %p61 = scmp.ne.s32.totalorder %s56, %s58
      %p62 = scmp.eq.s32.totalorder %s22, 0
      %p63 = por %p61, %p62
      %p64 = scmp.ne.s32.totalorder %s56, %s58
      %p65 = scmp.eq.s32.totalorder %s27, 1
      %p66 = por %p64, %p65
      %p67 = scmp.ne.s32.totalorder %s58, %s59
      %p68 = scmp.eq.s32.totalorder %s27, 0
      %p69 = por %p67, %p68
      %p70 = scmp.ne.s32.totalorder %s58, %s59
      %p71 = scmp.eq.s32.totalorder %s28, 1
      %p72 = por %p70, %p71
      %p74 = scmp.ne.s32.totalorder %s59, %s73
      %p75 = scmp.eq.s32.totalorder %s28, 0
      %p76 = por %p74, %p75
      %s78 = sadd.s32 %s77, 1
      %p81 = scmp.eq.s32.totalorder %s22, 1
      %p82 = scmp.ne.s32.totalorder %s77, %s79
      %p83 = scmp.eq.s32.totalorder %s22, 0
      %p84 = por %p82, %p83
      %p85 = scmp.ne.s32.totalorder %s77, %s79
      %p86 = scmp.eq.s32.totalorder %s27, 1
      %p87 = por %p85, %p86
      %p88 = scmp.ne.s32.totalorder %s79, %s80
      %p89 = scmp.eq.s32.totalorder %s27, 0
      %p90 = por %p88, %p89
      %p91 = scmp.ne.s32.totalorder %s79, %s80
      %p92 = scmp.eq.s32.totalorder %s28, 1
      %p93 = por %p91, %p92
      %p95 = scmp.ne.s32.totalorder %s80, %s94
      %p96 = scmp.eq.s32.totalorder %s28, 0
      %p97 = por %p95, %p96
      %s99 = sadd.s32 %s98, 1
      %p102 = scmp.eq.s32.totalorder %s22, 1
      %p103 = scmp.ne.s32.totalorder %s98, %s100
      %p104 = scmp.eq.s32.totalorder %s22, 0
      %p105 = por %p103, %p104
      %p106 = scmp.ne.s32.totalorder %s98, %s100
      %p107 = scmp.eq.s32.totalorder %s27, 1
      %p108 = por %p106, %p107
      %p109 = scmp.ne.s32.totalorder %s100, %s101
      %p110 = scmp.eq.s32.totalorder %s27, 0
      %p111 = por %p109, %p110
      %p112 = scmp.ne.s32.totalorder %s100, %s101
      %p113 = scmp.eq.s32.totalorder %s28, 1
      %p114 = por %p112, %p113
      %p116 = scmp.ne.s32.totalorder %s101, %s115
      %p117 = scmp.eq.s32.totalorder %s28, 0
      %p118 = por %p116, %p117
      %s120 = sadd.s32 %s119, 1
      %p123 = scmp.eq.s32.totalorder %s22, 1
      %p124 = scmp.ne.s32.totalorder %s119, %s121
      %p125 = scmp.eq.s32.totalorder %s22, 0
      %p126 = por %p124, %p125
      %p127 = scmp.ne.s32.totalorder %s119, %s121
      %p128 = scmp.eq.s32.totalorder %s27, 1
      %p129 = por %p127, %p128
      %p130 = scmp.ne.s32.totalorder %s121, %s122
      %p131 = scmp.eq.s32.totalorder %s27, 0
      %p132 = por %p130, %p131
      %p133 = scmp.ne.s32.totalorder %s121, %s122
      %p134 = scmp.eq.s32.totalorder %s28, 1
      %p135 = por %p133, %p134
      %p137 = scmp.ne.s32.totalorder %s122, %s136
      %p138 = scmp.eq.s32.totalorder %s28, 0
      %p139 = por %p137, %p138
      %s141 = sadd.s32 %s140, 1
      %p144 = scmp.eq.s32.totalorder %s22, 1
      %p145 = scmp.ne.s32.totalorder %s140, %s142
      %p146 = scmp.eq.s32.totalorder %s22, 0
      %p147 = por %p145, %p146
      %p148 = scmp.ne.s32.totalorder %s140, %s142
      %p149 = scmp.eq.s32.totalorder %s27, 1
      %p150 = por %p148, %p149
      %p151 = scmp.ne.s32.totalorder %s142, %s143
      %p152 = scmp.eq.s32.totalorder %s27, 0
      %p153 = por %p151, %p152
      %p154 = scmp.ne.s32.totalorder %s142, %s143
      %p155 = scmp.eq.s32.totalorder %s28, 1
      %p156 = por %p154, %p155
      %p158 = scmp.ne.s32.totalorder %s143, %s157
      %p159 = scmp.eq.s32.totalorder %s28, 0
      %p160 = por %p158, %p159
      %s162 = sadd.s32 %s161, 1
      %p165 = scmp.eq.s32.totalorder %s22, 1
      %p166 = scmp.ne.s32.totalorder %s161, %s163
      %p167 = scmp.eq.s32.totalorder %s22, 0
      %p168 = por %p166, %p167
      %p169 = scmp.ne.s32.totalorder %s161, %s163
      %p170 = scmp.eq.s32.totalorder %s27, 1
      %p171 = por %p169, %p170
      %p172 = scmp.ne.s32.totalorder %s163, %s164
      %p173 = scmp.eq.s32.totalorder %s27, 0
      %p174 = por %p172, %p173
      %p175 = scmp.ne.s32.totalorder %s163, %s164
      %p176 = scmp.eq.s32.totalorder %s28, 1
      %p177 = por %p175, %p176
      %p179 = scmp.ne.s32.totalorder %s164, %s178
      %p180 = scmp.eq.s32.totalorder %s28, 0
      %p181 = por %p179, %p180
      %s183 = sadd.s32 %s182, 1
      %p186 = scmp.eq.s32.totalorder %s22, 1
      %p187 = scmp.ne.s32.totalorder %s182, %s184
      %p188 = scmp.eq.s32.totalorder %s22, 0
      %p189 = por %p187, %p188
      %p190 = scmp.ne.s32.totalorder %s182, %s184
      %p191 = scmp.eq.s32.totalorder %s27, 1
      %p192 = por %p190, %p191
      %p193 = scmp.ne.s32.totalorder %s184, %s185
      %p194 = scmp.eq.s32.totalorder %s27, 0
      %p195 = por %p193, %p194
      %p196 = scmp.ne.s32.totalorder %s184, %s185
      %p197 = scmp.eq.s32.totalorder %s28, 1
      %p198 = por %p196, %p197
      %p200 = scmp.ne.s32.totalorder %s185, %s199
      %p201 = scmp.eq.s32.totalorder %s28, 0
      %p202 = por %p200, %p201
      %s203 = ssub.s32 %s22, %s29
      %p204 = scmp.eq.s32.totalorder %s203, 0
      %s206 = sadd.s32 %s205, 1
      %s207 = scalar_select %p204, %s205, %s206
      %p210 = pneg %p204
      %p211 = scmp.eq.s32.totalorder %s22, 1
      %p212 = por %p210, %p211
      %p213 = scmp.ne.s32.totalorder %s205, %s208
      %p214 = scmp.eq.s32.totalorder %s22, 0
      %p215 = por %p213, %p214
      %p216 = scmp.ne.s32.totalorder %s205, %s208
      %p217 = scmp.eq.s32.totalorder %s27, 1
      %p218 = por %p216, %p217
      %p219 = scmp.ne.s32.totalorder %s208, %s209
      %p220 = scmp.eq.s32.totalorder %s27, 0
      %p221 = por %p219, %p220
      %p222 = scmp.ne.s32.totalorder %s208, %s209
      %p223 = scmp.eq.s32.totalorder %s28, 1
      %p224 = por %p222, %p223
      %p226 = scmp.ne.s32.totalorder %s209, %s225
      %p227 = scmp.eq.s32.totalorder %s28, 0
      %p228 = por %p226, %p227
      %p229 = scmp.le.s32.totalorder 1, %s22
      %p230 = scmp.lt.s32.totalorder %s22, 3
      %p231 = pnand %p229, %p230
      %p232 = pneg %p231
      // Predicated region
      $region9: #{tpu_custom_call.1} parent=5 // pred_check
        _
      $region10: #{tpu_custom_call.1} parent=5 // pred_check_branch
        %234 = sbr.rel (%p231) target = $region12
      $region11: #{tpu_custom_call.1} parent=5 // pred_region
        %s235 = ssub.s32 %s22, 1
        // Predicated region
        $region13: #{tpu_custom_call.1} parent=11 // pred_check
          %p236 = pneg %p69
        $region14: #{tpu_custom_call.1} parent=11 // pred_check_branch
          %238 = sbr.rel (%p236) target = $region16
        $region15: #{tpu_custom_call.1} parent=11 // pred_region
          %s240 = ssub.s32 1536, 1536
          %241 = vsyncadd [#allocation8], %s240
          %s242 = sshll.u32 [#allocation7], 4
          %s243 = int_to_ptr.vmem [resolvable:$true] %s242
          %248 = dma.hbm_to_vmem [thread:$0]  %s1, 1536, %s243, [#allocation8], 64, 64, 4
        $region16: #{tpu_custom_call.1} parent=11 // pred_fallthru
          _
        // Predicated region
        $region17: #{tpu_custom_call.1} parent=11 // pred_check
          %p249 = pneg %p90
        $region18: #{tpu_custom_call.1} parent=11 // pred_check_branch
          %251 = sbr.rel (%p249) target = $region20
        $region19: #{tpu_custom_call.1} parent=11 // pred_region
          _
        $region20: #{tpu_custom_call.1} parent=11 // pred_fallthru
          _
        // Predicated region
        $region21: #{tpu_custom_call.1} parent=11 // pred_check
          %p252 = pneg %p111
        $region22: #{tpu_custom_call.1} parent=11 // pred_check_branch
          %254 = sbr.rel (%p252) target = $region24
        $region23: #{tpu_custom_call.1} parent=11 // pred_region
          %s256 = ssub.s32 3072, 3072
          %257 = vsyncadd [#allocation8], %s256
          %s258 = sshll.u32 [#allocation9], 4
          %s259 = int_to_ptr.vmem [resolvable:$true] %s258
          %264 = dma.hbm_to_vmem [thread:$0]  %s3, 3072, %s259, [#allocation8], 64, 64, 4
        $region24: #{tpu_custom_call.1} parent=11 // pred_fallthru
          _
        // Predicated region
        $region25: #{tpu_custom_call.1} parent=11 // pred_check
          %p265 = pneg %p132
        $region26: #{tpu_custom_call.1} parent=11 // pred_check_branch
          %267 = sbr.rel (%p265) target = $region28
        $region27: #{tpu_custom_call.1} parent=11 // pred_region
          _
        $region28: #{tpu_custom_call.1} parent=11 // pred_fallthru
          _
        // Predicated region
        $region29: #{tpu_custom_call.1} parent=11 // pred_check
          %p268 = pneg %p153
        $region30: #{tpu_custom_call.1} parent=11 // pred_check_branch
          %270 = sbr.rel (%p268) target = $region32
        $region31: #{tpu_custom_call.1} parent=11 // pred_region
          %s272 = ssub.s32 3072, 3072
          %273 = vsyncadd [#allocation11], %s272
          %s274 = sshll.u32 [#allocation10], 4
          %s275 = int_to_ptr.vmem [resolvable:$true] %s274
          %280 = dma.hbm_to_vmem [thread:$0]  %s5, 3072, %s275, [#allocation11], 64, 64, 4
        $region32: #{tpu_custom_call.1} parent=11 // pred_fallthru
          _
        // Predicated region
        $region33: #{tpu_custom_call.1} parent=11 // pred_check
          %p281 = pneg %p174
        $region34: #{tpu_custom_call.1} parent=11 // pred_check_branch
          %283 = sbr.rel (%p281) target = $region36
        $region35: #{tpu_custom_call.1} parent=11 // pred_region
          _
        $region36: #{tpu_custom_call.1} parent=11 // pred_fallthru
          _
        // Predicated region
        $region37: #{tpu_custom_call.1} parent=11 // pred_check
          %p284 = pneg %p195
        $region38: #{tpu_custom_call.1} parent=11 // pred_check_branch
          %286 = sbr.rel (%p284) target = $region40
        $region39: #{tpu_custom_call.1} parent=11 // pred_region
          %s288 = ssub.s32 512, 512
          %289 = vsyncadd [#allocation11], %s288
          %s290 = sshll.u32 [#allocation12], 4
          %s291 = int_to_ptr.vmem [resolvable:$true] %s290
          %296 = dma.hbm_to_vmem [thread:$0]  %s7, 512, %s291, [#allocation11], 64, 64, 4
        $region40: #{tpu_custom_call.1} parent=11 // pred_fallthru
          _
      $region12: #{tpu_custom_call.1} parent=5 // pred_fallthru
        _
      %p297 = scmp.lt.s32.totalorder %s22, 2
      // Predicated region
      $region41: #{tpu_custom_call.1} parent=5 // pred_check
        %p298 = pneg %p297
      $region42: #{tpu_custom_call.1} parent=5 // pred_check_branch
        %300 = sbr.rel (%p298) target = $region44
      $region43: #{tpu_custom_call.1} parent=5 // pred_region
        // Predicated region
        $region45: #{tpu_custom_call.1} parent=43 // pred_check
          %p301 = pneg %p42
        $region46: #{tpu_custom_call.1} parent=43 // pred_check_branch
          %303 = sbr.rel (%p301) target = $region48
        $region47: #{tpu_custom_call.1} parent=43 // pred_region
          %s304 = sand.u32 %s32, 1
          %s305 = scalar_lea.sflag [#allocation5], %s304
          %s306 = sand.u32 %s32, 1
          %s307 = smul.addr %s306, 16
          %s308 = scalar_lea.vmem [#allocation4], %s307
          %s310 = ssub.s32 256, 256
          %311 = vsyncadd %s305, %s310
          %s312 = smul.addr %s22, 2
          %s313 = smul.addr %s312, 128
          %s314 = scalar_lea.hbm %s0, %s313
          %s315 = sshll.u32 %s308, 4
          %s316 = int_to_ptr.vmem [resolvable:$true] %s315
          %321 = dma.hbm_to_vmem [thread:$0]  %s314, 256, %s316, %s305, 128, 128, 8
        $region48: #{tpu_custom_call.1} parent=43 // pred_fallthru
          _
      $region44: #{tpu_custom_call.1} parent=5 // pred_fallthru
        _
      %p322 = scmp.le.s32.totalorder 1, %s22
      %p323 = scmp.lt.s32.totalorder %s22, 3
      %p324 = pnand %p322, %p323
      %p325 = pneg %p324
      // Predicated region
      $region49: #{tpu_custom_call.1} parent=5 // pred_check
        _
      $region50: #{tpu_custom_call.1} parent=5 // pred_check_branch
        %327 = sbr.rel (%p324) target = $region52
      $region51: #{tpu_custom_call.1} parent=5 // pred_region
        %s328 = ssub.s32 %s22, 1
        %s329 = sand.u32 %s35, 1
        %s330 = scalar_lea.sflag [#allocation5], %s329
        %s331 = sand.u32 %s35, 1
        %s332 = smul.addr %s331, 16
        %s333 = scalar_lea.vmem [#allocation4], %s332
        // Predicated region
        $region53: #{tpu_custom_call.1} parent=51 // pred_check
          %p334 = pneg %p48
        $region54: #{tpu_custom_call.1} parent=51 // pred_check_branch
          %336 = sbr.rel (%p334) target = $region56
        $region55: #{tpu_custom_call.1} parent=51 // pred_region
          %337 = dma.done %s330, 256
        $region56: #{tpu_custom_call.1} parent=51 // pred_fallthru
          _
        // Predicated region
        $region57: #{tpu_custom_call.1} parent=51 // pred_check
          %p338 = pneg %p69
        $region58: #{tpu_custom_call.1} parent=51 // pred_check_branch
          %340 = sbr.rel (%p338) target = $region60
        $region59: #{tpu_custom_call.1} parent=51 // pred_region
          %341 = dma.done [#allocation8], 1536
        $region60: #{tpu_custom_call.1} parent=51 // pred_fallthru
          _
        // Predicated region
        $region61: #{tpu_custom_call.1} parent=51 // pred_check
          %p342 = pneg %p111
        $region62: #{tpu_custom_call.1} parent=51 // pred_check_branch
          %344 = sbr.rel (%p342) target = $region64
        $region63: #{tpu_custom_call.1} parent=51 // pred_region
          %345 = dma.done [#allocation8], 3072
        $region64: #{tpu_custom_call.1} parent=51 // pred_fallthru
          _
        // Predicated region
        $region65: #{tpu_custom_call.1} parent=51 // pred_check
          %p346 = pneg %p153
        $region66: #{tpu_custom_call.1} parent=51 // pred_check_branch
          %348 = sbr.rel (%p346) target = $region68
        $region67: #{tpu_custom_call.1} parent=51 // pred_region
          %349 = dma.done [#allocation11], 3072
        $region68: #{tpu_custom_call.1} parent=51 // pred_fallthru
          _
        // Predicated region
        $region69: #{tpu_custom_call.1} parent=51 // pred_check
          %p350 = pneg %p195
        $region70: #{tpu_custom_call.1} parent=51 // pred_check_branch
          %352 = sbr.rel (%p350) target = $region72
        $region71: #{tpu_custom_call.1} parent=51 // pred_region
          %353 = dma.done [#allocation11], 512
        $region72: #{tpu_custom_call.1} parent=51 // pred_fallthru
          _
        %s354 = sand.u32 %s35, 1
        %s355 = scalar_lea.sflag [#allocation5], %s354
        %s356 = sand.u32 %s35, 1
        %s357 = smul.addr %s356, 16
        %s358 = scalar_lea.vmem [#allocation4], %s357
        %p359 = pneg %p48
        %p360 = pneg %p45
        %p361 = pneg %p69
        %p362 = pneg %p66
        %p363 = pneg %p90
        %p364 = pneg %p87
        %p365 = pneg %p111
        %p366 = pneg %p108
        %p367 = pneg %p132
        %p368 = pneg %p129
        %p369 = pneg %p153
        %p370 = pneg %p150
        %p371 = pneg %p174
        %p372 = pneg %p171
        %p373 = pneg %p195
        %p374 = pneg %p192
        %p375 = pneg %p221
        %p376 = pneg %p218
        %s377 = sand.u32 %s208, 1
        %s378 = scalar_lea.sflag [#allocation6], %s377
        %s379 = sand.u32 %s208, 1
        %s380 = smul.addr %s379, 16
        %s381 = scalar_lea.vmem [#allocation13], %s380
        %vm383 = vcmask 516096
        %vm384 = vsmask.f32 256
        %vm385 = vmand %vm383, %vm384
        %v386 = vld [vmem:[#allocation2] sm:$0x1]
        %v387 = vsel %vm385, 0, %v386
        %388 = vst [vmem:[#allocation2] sm:$0x1] %v387
        %vm389 = vsmask.f32 7938
        %vm390 = vmand %vm383, %vm389
        %v391 = vld [vmem:[#allocation2 + $0x8] sm:$0x1]
        %v392 = vsel %vm390, 0, %v391
        %393 = vst [vmem:[#allocation2 + $0x8] sm:$0x1] %v392
        %vm394 = vcmask 1040384
        %vm395 = vmand %vm394, %vm384
        %v396 = vld [vmem:[#allocation3] sm:$0x1]
        %v397 = vsel %vm395, 0, %v396
        %398 = vst [vmem:[#allocation3] sm:$0x1] %v397
        %vm399 = vmand %vm394, %vm389
        %v400 = vld [vmem:[#allocation3 + $0x8] sm:$0x1]
        %v401 = vsel %vm399, 0, %v400
        %402 = vst [vmem:[#allocation3 + $0x8] sm:$0x1] %v401
        %v403 = vld [vmem:[%s333] sm:$0xff]
        %v404 = vld [vmem:[%s333 + $0x8] sm:$0xff]
        %v405 = vpack.c.bf16 %v404, %v403
        %v407 = vunpack.c.l.b16 %v405
        %v408 = vunpack.c.h.b16 %v405
        %v409 = vpack.c.b16 %v407, %v407
        %v410 = vpack.c.b16 %v408, %v408
        %vm411 = vsmask.f32 4368
        %vm412 = vmor %vm384, %vm411
        %v414 = vshrl.u32 %v409, 16
        %v416 = vrot.slane %v414, 7
        %v417 = vshll.u32 %v409, 16
        %v419 = vor.u32 %v416, %v417
        %v420 = vrot.slane %v416, 4
        %v422 = vshrl.u32 %v410, 16
        %v424 = vrot.slane %v422, 7
        %v425 = vshll.u32 %v410, 16
        %v427 = vor.u32 %v424, %v425
        %v428 = vsel %vm412, %v420, %v427
        %v429 = vrot.slane %v424, 4
        %vm433 = vcmask 519168
        %vm434 = vmand %vm433, %vm389
        %v435 = vld [vmem:[#allocation2] sm:$0xf]
        %v436 = vsel %vm434, %v419, %v435
        %437 = vst [vmem:[#allocation2] sm:$0xf] %v436
        %vm438 = vcmask 519168
        %439 = vst.msk [vmem:[#allocation2 + $0x4] sm:$0xf] %vm438, %v428
        %v440 = vld [vmem:[#allocation2 + $0x8] sm:$0x1]
        %v441 = vsel %vm385, %v429, %v440
        %442 = vst [vmem:[#allocation2 + $0x8] sm:$0x1] %v441
        %v443 = vld [vmem:[%s2] sm:$0x1]
        %v444 = vld [vmem:[#allocation2] sm:$0xf]
        %v445 = vld [vmem:[#allocation2 + $0x4] sm:$0xf]
        %v446 = vld [vmem:[#allocation7] sm:$0xf]
        %v447 = vld [vmem:[#allocation7 + $0x4] sm:$0xf]
        %v448 = vld [vmem:[#allocation7 + $0x8] sm:$0xf]
        %v449 = vld [vmem:[#allocation7 + $0xc] sm:$0xf]
        %v450 = vld [vmem:[#allocation7 + $0x10] sm:$0xf]
        %v451 = vld [vmem:[#allocation7 + $0x14] sm:$0xf]
        %v452 = vld [vmem:[#allocation7 + $0x18] sm:$0xf]
        %v453 = vld [vmem:[#allocation7 + $0x1c] sm:$0xf]
        %v456 = vunpack.c.l.b16 %v444
        %v457 = vunpack.c.l.b16 %v445
        %v458 = vpack.c.b16 %v457, %v456
        %v467 = vunpack.c.l.b16 %v446
        %v468 = vunpack.c.l.b16 %v447
        %v469 = vunpack.c.l.b16 %v448
        %v470 = vunpack.c.l.b16 %v449
        %v471 = vunpack.c.l.b16 %v450
        %v472 = vunpack.c.l.b16 %v451
        %v473 = vunpack.c.l.b16 %v452
        %v474 = vunpack.c.l.b16 %v453
        %v475 = vpack.c.b16 %v468, %v467
        %v476 = vpack.c.b16 %v470, %v469
        %v477 = vpack.c.b16 %v472, %v471
        %v478 = vpack.c.b16 %v474, %v473
        %vm483 = vcmask 523264
        %v485 = vsel %vm483, %v458, 0
        %487 = vmatprep.subr.bf16.mxu0 0
        %488 = vmatpush1.bf16.msra.mxu0 0
        %489 = vmatprep.subr.bf16.mxu0 0
        %490 = vmatpush1.bf16.msra.mxu0 0
        %491 = vmatprep.subr.bf16.mxu0 0
        %492 = vmatpush1.bf16.msra.mxu0 0
        %493 = vmatprep.subr.bf16.mxu0 0
        %494 = vmatpush1.bf16.msra.mxu0 0
        %495 = vmatprep.subr.bf16.mxu0 0
        %496 = vmatpush1.bf16.msra.mxu0 %v478
        %497 = vmatprep.subr.bf16.mxu0 0
        %498 = vmatpush1.bf16.msra.mxu0 %v477
        %499 = vmatprep.subr.bf16.mxu0 0
        %500 = vmatpush1.bf16.msra.mxu0 %v476
        %501 = vmatprep.subr.bf16.mxu0 0
        %502 = vmatpush1.bf16.msra.mxu0 %v475
        %503 = vmatprep.subr.bf16.mxu0 0
        %504 = vmatpush2.bf16.msra.mxu0 0
        %505 = vmatprep.subr.bf16.mxu0 0
        %506 = vmatpush2.bf16.msra.mxu0 0
        %507 = vmatprep.subr.bf16.mxu0 0
        %508 = vmatpush2.bf16.msra.mxu0 0
        %509 = vmatprep.subr.bf16.mxu0 0
        %510 = vmatpush2.bf16.msra.mxu0 0
        %511 = vmatprep.subr.bf16.mxu0 0
        %512 = vmatpush2.bf16.msra.mxu0 0
        %513 = vmatprep.subr.bf16.mxu0 0
        %514 = vmatpush2.bf16.msra.mxu0 0
        %515 = vmatprep.subr.bf16.mxu0 0
        %516 = vmatpush2.bf16.msra.mxu0 0
        %517 = vmatprep.subr.bf16.mxu0 0
        %518 = vmatpush2.bf16.msra.mxu0 0
        %519 = vmatprep.mubr.bf16.mxu0 0
        %520 = vmatmul.mubr.bf16.gmra.mxu0 %v485
        %v521 = vpop.f32.mrf.mxu0
        %v522 = vadd.f32 0.0, %v521
        %v523 = vpop.f32.mrf.mxu0
        %v524 = vpop.f32.mrf.mxu0
        %v525 = vadd.f32 0.0, %v524
        %v526 = vpop.f32.mrf.mxu0
        %527 = vdwg.mxu0
        %v529 = vlaneseq
        %v530 = vshrl.u32 %v529, 7
        %v531 = vsub.s32 0, %v530
        %v532 = vrot.slane %v443, %v531
        %v534 = vadd.f32 %v532, %v522
        %v535 = vadd.f32 %v532, %v525
        %v536 = vld [vmem:[#allocation2] sm:$0xf]
        %v537 = vld [vmem:[#allocation2 + $0x4] sm:$0xf]
        %v538 = vld [vmem:[#allocation2 + $0x8] sm:$0x1]
        %s539 = scalar_lea.vmem [#allocation7], 32
        %v540 = vld [vmem:[%s539] sm:$0xf]
        %v541 = vld [vmem:[%s539 + $0x4] sm:$0xf]
        %v542 = vld [vmem:[%s539 + $0x8] sm:$0xf]
        %v543 = vld [vmem:[%s539 + $0xc] sm:$0xf]
        %v544 = vld [vmem:[%s539 + $0x10] sm:$0xf]
        %v545 = vld [vmem:[%s539 + $0x14] sm:$0xf]
        %v546 = vld [vmem:[%s539 + $0x18] sm:$0xf]
        %v547 = vld [vmem:[%s539 + $0x1c] sm:$0xf]
        %v551 = vunpack.c.l.b16 %v536
        %v552 = vunpack.c.l.b16 %v537
        %v553 = vunpack.c.l.b16 %v538
        %v554 = vpack.c.b16 %v552, %v551
        %v555 = vpack.c.b16 %v553, %v553
        %vm556 = vsmask.f32 7424
        %v558 = vshrl.u32 %v554, 16
        %v560 = vshll.u32 %v554, 16
        %v562 = vrot.slane %v560, 1
        %v563 = vor.u32 %v558, %v562
        %v565 = vshll.u32 %v555, 16
        %v567 = vrot.slane %v565, 1
        %v568 = vsel %vm556, %v563, %v567
        %v577 = vunpack.c.l.b16 %v540
        %v578 = vunpack.c.l.b16 %v541
        %v579 = vunpack.c.l.b16 %v542
        %v580 = vunpack.c.l.b16 %v543
        %v581 = vunpack.c.l.b16 %v544
        %v582 = vunpack.c.l.b16 %v545
        %v583 = vunpack.c.l.b16 %v546
        %v584 = vunpack.c.l.b16 %v547
        %v585 = vpack.c.b16 %v578, %v577
        %v586 = vpack.c.b16 %v580, %v579
        %v587 = vpack.c.b16 %v582, %v581
        %v588 = vpack.c.b16 %v584, %v583
        %v594 = vsel %vm483, %v568, 0
        %596 = vmatprep.subr.bf16.mxu0 0
        %597 = vmatpush1.bf16.msra.mxu0 0
        %598 = vmatprep.subr.bf16.mxu0 0
        %599 = vmatpush1.bf16.msra.mxu0 0
        %600 = vmatprep.subr.bf16.mxu0 0
        %601 = vmatpush1.bf16.msra.mxu0 0
        %602 = vmatprep.subr.bf16.mxu0 0
        %603 = vmatpush1.bf16.msra.mxu0 0
        %604 = vmatprep.subr.bf16.mxu0 0
        %605 = vmatpush1.bf16.msra.mxu0 %v588
        %606 = vmatprep.subr.bf16.mxu0 0
        %607 = vmatpush1.bf16.msra.mxu0 %v587
        %608 = vmatprep.subr.bf16.mxu0 0
        %609 = vmatpush1.bf16.msra.mxu0 %v586
        %610 = vmatprep.subr.bf16.mxu0 0
        %611 = vmatpush1.bf16.msra.mxu0 %v585
        %612 = vmatprep.subr.bf16.mxu0 0
        %613 = vmatpush2.bf16.msra.mxu0 0
        %614 = vmatprep.subr.bf16.mxu0 0
        %615 = vmatpush2.bf16.msra.mxu0 0
        %616 = vmatprep.subr.bf16.mxu0 0
        %617 = vmatpush2.bf16.msra.mxu0 0
        %618 = vmatprep.subr.bf16.mxu0 0
        %619 = vmatpush2.bf16.msra.mxu0 0
        %620 = vmatprep.subr.bf16.mxu0 0
        %621 = vmatpush2.bf16.msra.mxu0 0
        %622 = vmatprep.subr.bf16.mxu0 0
        %623 = vmatpush2.bf16.msra.mxu0 0
        %624 = vmatprep.subr.bf16.mxu0 0
        %625 = vmatpush2.bf16.msra.mxu0 0
        %626 = vmatprep.subr.bf16.mxu0 0
        %627 = vmatpush2.bf16.msra.mxu0 0
        %628 = vmatprep.mubr.bf16.mxu0 0
        %629 = vmatmul.mubr.bf16.gmra.mxu0 %v594
        %v630 = vpop.f32.mrf.mxu0
        %v631 = vadd.f32 0.0, %v630
        %v632 = vpop.f32.mrf.mxu0
        %v633 = vpop.f32.mrf.mxu0
        %v634 = vadd.f32 0.0, %v633
        %v635 = vpop.f32.mrf.mxu0
        %636 = vdwg.mxu0
        %v637 = vadd.f32 %v534, %v631
        %v638 = vadd.f32 %v535, %v634
        %v639 = vld [vmem:[#allocation2] sm:$0xe]
        %s640 = scalar_lea.vmem [#allocation7], 64
        %v641 = vld [vmem:[%s640] sm:$0xf]
        %v642 = vld [vmem:[%s640 + $0x4] sm:$0xf]
        %v643 = vld [vmem:[%s640 + $0x8] sm:$0xf]
        %v644 = vld [vmem:[%s640 + $0xc] sm:$0xf]
        %v645 = vld [vmem:[%s640 + $0x10] sm:$0xf]
        %v646 = vld [vmem:[%s640 + $0x14] sm:$0xf]
        %v647 = vld [vmem:[%s640 + $0x18] sm:$0xf]
        %v648 = vld [vmem:[%s640 + $0x1c] sm:$0xf]
        %v650 = vunpack.c.l.b16 %v639
        %v651 = vpack.c.b16 %v552, %v650
        %vm652 = vcmask 1046528
        %v653 = vrot.slane %v651, 1
        %v654 = vrot.slane %v555, 1
        %v655 = vsel %vm652, %v653, %v654
        %v664 = vunpack.c.l.b16 %v641
        %v665 = vunpack.c.l.b16 %v642
        %v666 = vunpack.c.l.b16 %v643
        %v667 = vunpack.c.l.b16 %v644
        %v668 = vunpack.c.l.b16 %v645
        %v669 = vunpack.c.l.b16 %v646
        %v670 = vunpack.c.l.b16 %v647
        %v671 = vunpack.c.l.b16 %v648
        %v672 = vpack.c.b16 %v665, %v664
        %v673 = vpack.c.b16 %v667, %v666
        %v674 = vpack.c.b16 %v669, %v668
        %v675 = vpack.c.b16 %v671, %v670
        %v681 = vsel %vm483, %v655, 0
        %683 = vmatprep.subr.bf16.mxu0 0
        %684 = vmatpush1.bf16.msra.mxu0 0
        %685 = vmatprep.subr.bf16.mxu0 0
        %686 = vmatpush1.bf16.msra.mxu0 0
        %687 = vmatprep.subr.bf16.mxu0 0
        %688 = vmatpush1.bf16.msra.mxu0 0
        %689 = vmatprep.subr.bf16.mxu0 0
        %690 = vmatpush1.bf16.msra.mxu0 0
        %691 = vmatprep.subr.bf16.mxu0 0
        %692 = vmatpush1.bf16.msra.mxu0 %v675
        %693 = vmatprep.subr.bf16.mxu0 0
        %694 = vmatpush1.bf16.msra.mxu0 %v674
        %695 = vmatprep.subr.bf16.mxu0 0
        %696 = vmatpush1.bf16.msra.mxu0 %v673
        %697 = vmatprep.subr.bf16.mxu0 0
        %698 = vmatpush1.bf16.msra.mxu0 %v672
        %699 = vmatprep.subr.bf16.mxu0 0
        %700 = vmatpush2.bf16.msra.mxu0 0
        %701 = vmatprep.subr.bf16.mxu0 0
        %702 = vmatpush2.bf16.msra.mxu0 0
        %703 = vmatprep.subr.bf16.mxu0 0
        %704 = vmatpush2.bf16.msra.mxu0 0
        %705 = vmatprep.subr.bf16.mxu0 0
        %706 = vmatpush2.bf16.msra.mxu0 0
        %707 = vmatprep.subr.bf16.mxu0 0
        %708 = vmatpush2.bf16.msra.mxu0 0
        %709 = vmatprep.subr.bf16.mxu0 0
        %710 = vmatpush2.bf16.msra.mxu0 0
        %711 = vmatprep.subr.bf16.mxu0 0
        %712 = vmatpush2.bf16.msra.mxu0 0
        %713 = vmatprep.subr.bf16.mxu0 0
        %714 = vmatpush2.bf16.msra.mxu0 0
        %715 = vmatprep.mubr.bf16.mxu0 0
        %716 = vmatmul.mubr.bf16.gmra.mxu0 %v681
        %v717 = vpop.f32.mrf.mxu0
        %v718 = vadd.f32 0.0, %v717
        %v719 = vpop.f32.mrf.mxu0
        %v720 = vpop.f32.mrf.mxu0
        %v721 = vadd.f32 0.0, %v720
        %v722 = vpop.f32.mrf.mxu0
        %723 = vdwg.mxu0
        %v724 = vadd.f32 %v637, %v718
        %v725 = vadd.f32 %v638, %v721
        %v726 = vmax.f32 %v724, 0.0
        %v727 = vmax.f32 %v725, 0.0
        %v728 = vpack.c.bf16 %v727, %v726
        %v730 = vunpack.c.l.b16 %v728
        %v731 = vunpack.c.h.b16 %v728
        %v732 = vpack.c.b16 %v730, %v730
        %v733 = vpack.c.b16 %v731, %v731
        %v735 = vshrl.u32 %v732, 16
        %v737 = vrot.slane %v735, 7
        %v738 = vshll.u32 %v732, 16
        %v740 = vor.u32 %v737, %v738
        %v741 = vrot.slane %v737, 4
        %v743 = vshrl.u32 %v733, 16
        %v745 = vrot.slane %v743, 7
        %v746 = vshll.u32 %v733, 16
        %v748 = vor.u32 %v745, %v746
        %v749 = vsel %vm412, %v741, %v748
        %v750 = vrot.slane %v745, 4
        %vm754 = vcmask 1043456
        %vm755 = vmand %vm754, %vm389
        %v756 = vld [vmem:[#allocation3] sm:$0xf]
        %v757 = vsel %vm755, %v740, %v756
        %758 = vst [vmem:[#allocation3] sm:$0xf] %v757
        %759 = vst [vmem:[#allocation3 + $0x4] sm:$0xf] %v749
        %v760 = vld [vmem:[#allocation3 + $0x8] sm:$0x1]
        %v761 = vsel %vm395, %v750, %v760
        %762 = vst [vmem:[#allocation3 + $0x8] sm:$0x1] %v761
        %v763 = vld [vmem:[%s4] sm:$0x1]
        %v764 = vld [vmem:[#allocation3] sm:$0xf]
        %v765 = vld [vmem:[#allocation3 + $0x4] sm:$0xf]
        %v766 = vld [vmem:[#allocation9] sm:$0xf]
        %v767 = vld [vmem:[#allocation9 + $0x4] sm:$0xf]
        %v768 = vld [vmem:[#allocation9 + $0x8] sm:$0xf]
        %v769 = vld [vmem:[#allocation9 + $0xc] sm:$0xf]
        %v770 = vld [vmem:[#allocation9 + $0x10] sm:$0xf]
        %v771 = vld [vmem:[#allocation9 + $0x14] sm:$0xf]
        %v772 = vld [vmem:[#allocation9 + $0x18] sm:$0xf]
        %v773 = vld [vmem:[#allocation9 + $0x1c] sm:$0xf]
        %v774 = vld [vmem:[#allocation9 + $0x20] sm:$0xf]
        %v775 = vld [vmem:[#allocation9 + $0x24] sm:$0xf]
        %v776 = vld [vmem:[#allocation9 + $0x28] sm:$0xf]
        %v777 = vld [vmem:[#allocation9 + $0x2c] sm:$0xf]
        %v778 = vld [vmem:[#allocation9 + $0x30] sm:$0xf]
        %v779 = vld [vmem:[#allocation9 + $0x34] sm:$0xf]
        %v780 = vld [vmem:[#allocation9 + $0x38] sm:$0xf]
        %v781 = vld [vmem:[#allocation9 + $0x3c] sm:$0xf]
        %v784 = vunpack.c.l.b16 %v764
        %v785 = vunpack.c.l.b16 %v765
        %v786 = vpack.c.b16 %v785, %v784
        %v804 = vunpack.c.l.b16 %v766
        %v805 = vunpack.c.l.b16 %v767
        %v806 = vunpack.c.l.b16 %v768
        %v807 = vunpack.c.l.b16 %v769
        %v808 = vunpack.c.l.b16 %v770
        %v809 = vunpack.c.l.b16 %v771
        %v810 = vunpack.c.l.b16 %v772
        %v811 = vunpack.c.l.b16 %v773
        %v812 = vunpack.c.l.b16 %v774
        %v813 = vunpack.c.l.b16 %v775
        %v814 = vunpack.c.l.b16 %v776
        %v815 = vunpack.c.l.b16 %v777
        %v816 = vunpack.c.l.b16 %v778
        %v817 = vunpack.c.l.b16 %v779
        %v818 = vunpack.c.l.b16 %v780
        %v819 = vunpack.c.l.b16 %v781
        %v820 = vpack.c.b16 %v805, %v804
        %v821 = vpack.c.b16 %v807, %v806
        %v822 = vpack.c.b16 %v809, %v808
        %v823 = vpack.c.b16 %v811, %v810
        %v824 = vpack.c.b16 %v813, %v812
        %v825 = vpack.c.b16 %v815, %v814
        %v826 = vpack.c.b16 %v817, %v816
        %v827 = vpack.c.b16 %v819, %v818
        %836 = vmatprep.subr.bf16.mxu0 0
        %837 = vmatpush1.bf16.msra.mxu0 %v827
        %838 = vmatprep.subr.bf16.mxu0 0
        %839 = vmatpush1.bf16.msra.mxu0 %v826
        %840 = vmatprep.subr.bf16.mxu0 0
        %841 = vmatpush1.bf16.msra.mxu0 %v825
        %842 = vmatprep.subr.bf16.mxu0 0
        %843 = vmatpush1.bf16.msra.mxu0 %v824
        %844 = vmatprep.subr.bf16.mxu0 0
        %845 = vmatpush1.bf16.msra.mxu0 %v823
        %846 = vmatprep.subr.bf16.mxu0 0
        %847 = vmatpush1.bf16.msra.mxu0 %v822
        %848 = vmatprep.subr.bf16.mxu0 0
        %849 = vmatpush1.bf16.msra.mxu0 %v821
        %850 = vmatprep.subr.bf16.mxu0 0
        %851 = vmatpush1.bf16.msra.mxu0 %v820
        %852 = vmatprep.subr.bf16.mxu0 0
        %853 = vmatpush2.bf16.msra.mxu0 0
        %854 = vmatprep.subr.bf16.mxu0 0
        %855 = vmatpush2.bf16.msra.mxu0 0
        %856 = vmatprep.subr.bf16.mxu0 0
        %857 = vmatpush2.bf16.msra.mxu0 0
        %858 = vmatprep.subr.bf16.mxu0 0
        %859 = vmatpush2.bf16.msra.mxu0 0
        %860 = vmatprep.subr.bf16.mxu0 0
        %861 = vmatpush2.bf16.msra.mxu0 0
        %862 = vmatprep.subr.bf16.mxu0 0
        %863 = vmatpush2.bf16.msra.mxu0 0
        %864 = vmatprep.subr.bf16.mxu0 0
        %865 = vmatpush2.bf16.msra.mxu0 0
        %866 = vmatprep.subr.bf16.mxu0 0
        %867 = vmatpush2.bf16.msra.mxu0 0
        %868 = vmatprep.mubr.bf16.mxu0 0
        %869 = vmatmul.mubr.bf16.gmra.mxu0 %v786
        %v870 = vpop.f32.mrf.mxu0
        %v871 = vadd.f32 0.0, %v870
        %v872 = vpop.f32.mrf.mxu0
        %v873 = vpop.f32.mrf.mxu0
        %v874 = vadd.f32 0.0, %v873
        %v875 = vpop.f32.mrf.mxu0
        %876 = vdwg.mxu0
        %v878 = vlaneseq
        %v879 = vshrl.u32 %v878, 7
        %v880 = vsub.s32 0, %v879
        %v881 = vrot.slane %v763, %v880
        %v883 = vadd.f32 %v881, %v871
        %v884 = vadd.f32 %v881, %v874
        %v885 = vld [vmem:[#allocation3] sm:$0xf]
        %v886 = vld [vmem:[#allocation3 + $0x4] sm:$0xf]
        %v887 = vld [vmem:[#allocation3 + $0x8] sm:$0x1]
        %s888 = scalar_lea.vmem [#allocation9], 64
        %v889 = vld [vmem:[%s888] sm:$0xf]
        %v890 = vld [vmem:[%s888 + $0x4] sm:$0xf]
        %v891 = vld [vmem:[%s888 + $0x8] sm:$0xf]
        %v892 = vld [vmem:[%s888 + $0xc] sm:$0xf]
        %v893 = vld [vmem:[%s888 + $0x10] sm:$0xf]
        %v894 = vld [vmem:[%s888 + $0x14] sm:$0xf]
        %v895 = vld [vmem:[%s888 + $0x18] sm:$0xf]
        %v896 = vld [vmem:[%s888 + $0x1c] sm:$0xf]
        %v897 = vld [vmem:[%s888 + $0x20] sm:$0xf]
        %v898 = vld [vmem:[%s888 + $0x24] sm:$0xf]
        %v899 = vld [vmem:[%s888 + $0x28] sm:$0xf]
        %v900 = vld [vmem:[%s888 + $0x2c] sm:$0xf]
        %v901 = vld [vmem:[%s888 + $0x30] sm:$0xf]
        %v902 = vld [vmem:[%s888 + $0x34] sm:$0xf]
        %v903 = vld [vmem:[%s888 + $0x38] sm:$0xf]
        %v904 = vld [vmem:[%s888 + $0x3c] sm:$0xf]
        %v908 = vunpack.c.l.b16 %v885
        %v909 = vunpack.c.l.b16 %v886
        %v910 = vunpack.c.l.b16 %v887
        %v911 = vpack.c.b16 %v909, %v908
        %v912 = vpack.c.b16 %v910, %v910
        %v914 = vshrl.u32 %v911, 16
        %v916 = vshll.u32 %v911, 16
        %v918 = vrot.slane %v916, 1
        %v919 = vor.u32 %v914, %v918
        %v921 = vshll.u32 %v912, 16
        %v923 = vrot.slane %v921, 1
        %v924 = vsel %vm556, %v919, %v923
        %v942 = vunpack.c.l.b16 %v889
        %v943 = vunpack.c.l.b16 %v890
        %v944 = vunpack.c.l.b16 %v891
        %v945 = vunpack.c.l.b16 %v892
        %v946 = vunpack.c.l.b16 %v893
        %v947 = vunpack.c.l.b16 %v894
        %v948 = vunpack.c.l.b16 %v895
        %v949 = vunpack.c.l.b16 %v896
        %v950 = vunpack.c.l.b16 %v897
        %v951 = vunpack.c.l.b16 %v898
        %v952 = vunpack.c.l.b16 %v899
        %v953 = vunpack.c.l.b16 %v900
        %v954 = vunpack.c.l.b16 %v901
        %v955 = vunpack.c.l.b16 %v902
        %v956 = vunpack.c.l.b16 %v903
        %v957 = vunpack.c.l.b16 %v904
        %v958 = vpack.c.b16 %v943, %v942
        %v959 = vpack.c.b16 %v945, %v944
        %v960 = vpack.c.b16 %v947, %v946
        %v961 = vpack.c.b16 %v949, %v948
        %v962 = vpack.c.b16 %v951, %v950
        %v963 = vpack.c.b16 %v953, %v952
        %v964 = vpack.c.b16 %v955, %v954
        %v965 = vpack.c.b16 %v957, %v956
        %974 = vmatprep.subr.bf16.mxu0 0
        %975 = vmatpush1.bf16.msra.mxu0 %v965
        %976 = vmatprep.subr.bf16.mxu0 0
        %977 = vmatpush1.bf16.msra.mxu0 %v964
        %978 = vmatprep.subr.bf16.mxu0 0
        %979 = vmatpush1.bf16.msra.mxu0 %v963
        %980 = vmatprep.subr.bf16.mxu0 0
        %981 = vmatpush1.bf16.msra.mxu0 %v962
        %982 = vmatprep.subr.bf16.mxu0 0
        %983 = vmatpush1.bf16.msra.mxu0 %v961
        %984 = vmatprep.subr.bf16.mxu0 0
        %985 = vmatpush1.bf16.msra.mxu0 %v960
        %986 = vmatprep.subr.bf16.mxu0 0
        %987 = vmatpush1.bf16.msra.mxu0 %v959
        %988 = vmatprep.subr.bf16.mxu0 0
        %989 = vmatpush1.bf16.msra.mxu0 %v958
        %990 = vmatprep.subr.bf16.mxu0 0
        %991 = vmatpush2.bf16.msra.mxu0 0
        %992 = vmatprep.subr.bf16.mxu0 0
        %993 = vmatpush2.bf16.msra.mxu0 0
        %994 = vmatprep.subr.bf16.mxu0 0
        %995 = vmatpush2.bf16.msra.mxu0 0
        %996 = vmatprep.subr.bf16.mxu0 0
        %997 = vmatpush2.bf16.msra.mxu0 0
        %998 = vmatprep.subr.bf16.mxu0 0
        %999 = vmatpush2.bf16.msra.mxu0 0
        %1000 = vmatprep.subr.bf16.mxu0 0
        %1001 = vmatpush2.bf16.msra.mxu0 0
        %1002 = vmatprep.subr.bf16.mxu0 0
        %1003 = vmatpush2.bf16.msra.mxu0 0
        %1004 = vmatprep.subr.bf16.mxu0 0
        %1005 = vmatpush2.bf16.msra.mxu0 0
        %1006 = vmatprep.mubr.bf16.mxu0 0
        %1007 = vmatmul.mubr.bf16.gmra.mxu0 %v924
        %v1008 = vpop.f32.mrf.mxu0
        %v1009 = vadd.f32 0.0, %v1008
        %v1010 = vpop.f32.mrf.mxu0
        %v1011 = vpop.f32.mrf.mxu0
        %v1012 = vadd.f32 0.0, %v1011
        %v1013 = vpop.f32.mrf.mxu0
        %1014 = vdwg.mxu0
        %v1015 = vadd.f32 %v883, %v1009
        %v1016 = vadd.f32 %v884, %v1012
        %v1017 = vld [vmem:[#allocation3] sm:$0xe]
        %s1018 = scalar_lea.vmem [#allocation9], 128
        %v1019 = vld [vmem:[%s1018] sm:$0xf]
        %v1020 = vld [vmem:[%s1018 + $0x4] sm:$0xf]
        %v1021 = vld [vmem:[%s1018 + $0x8] sm:$0xf]
        %v1022 = vld [vmem:[%s1018 + $0xc] sm:$0xf]
        %v1023 = vld [vmem:[%s1018 + $0x10] sm:$0xf]
        %v1024 = vld [vmem:[%s1018 + $0x14] sm:$0xf]
        %v1025 = vld [vmem:[%s1018 + $0x18] sm:$0xf]
        %v1026 = vld [vmem:[%s1018 + $0x1c] sm:$0xf]
        %v1027 = vld [vmem:[%s1018 + $0x20] sm:$0xf]
        %v1028 = vld [vmem:[%s1018 + $0x24] sm:$0xf]
        %v1029 = vld [vmem:[%s1018 + $0x28] sm:$0xf]
        %v1030 = vld [vmem:[%s1018 + $0x2c] sm:$0xf]
        %v1031 = vld [vmem:[%s1018 + $0x30] sm:$0xf]
        %v1032 = vld [vmem:[%s1018 + $0x34] sm:$0xf]
        %v1033 = vld [vmem:[%s1018 + $0x38] sm:$0xf]
        %v1034 = vld [vmem:[%s1018 + $0x3c] sm:$0xf]
        %v1036 = vunpack.c.l.b16 %v1017
        %v1037 = vpack.c.b16 %v909, %v1036
        %v1038 = vrot.slane %v1037, 1
        %v1039 = vrot.slane %v912, 1
        %v1040 = vsel %vm652, %v1038, %v1039
        %v1058 = vunpack.c.l.b16 %v1019
        %v1059 = vunpack.c.l.b16 %v1020
        %v1060 = vunpack.c.l.b16 %v1021
        %v1061 = vunpack.c.l.b16 %v1022
        %v1062 = vunpack.c.l.b16 %v1023
        %v1063 = vunpack.c.l.b16 %v1024
        %v1064 = vunpack.c.l.b16 %v1025
        %v1065 = vunpack.c.l.b16 %v1026
        %v1066 = vunpack.c.l.b16 %v1027
        %v1067 = vunpack.c.l.b16 %v1028
        %v1068 = vunpack.c.l.b16 %v1029
        %v1069 = vunpack.c.l.b16 %v1030
        %v1070 = vunpack.c.l.b16 %v1031
        %v1071 = vunpack.c.l.b16 %v1032
        %v1072 = vunpack.c.l.b16 %v1033
        %v1073 = vunpack.c.l.b16 %v1034
        %v1074 = vpack.c.b16 %v1059, %v1058
        %v1075 = vpack.c.b16 %v1061, %v1060
        %v1076 = vpack.c.b16 %v1063, %v1062
        %v1077 = vpack.c.b16 %v1065, %v1064
        %v1078 = vpack.c.b16 %v1067, %v1066
        %v1079 = vpack.c.b16 %v1069, %v1068
        %v1080 = vpack.c.b16 %v1071, %v1070
        %v1081 = vpack.c.b16 %v1073, %v1072
        %1090 = vmatprep.subr.bf16.mxu0 0
        %1091 = vmatpush1.bf16.msra.mxu0 %v1081
        %1092 = vmatprep.subr.bf16.mxu0 0
        %1093 = vmatpush1.bf16.msra.mxu0 %v1080
        %1094 = vmatprep.subr.bf16.mxu0 0
        %1095 = vmatpush1.bf16.msra.mxu0 %v1079
        %1096 = vmatprep.subr.bf16.mxu0 0
        %1097 = vmatpush1.bf16.msra.mxu0 %v1078
        %1098 = vmatprep.subr.bf16.mxu0 0
        %1099 = vmatpush1.bf16.msra.mxu0 %v1077
        %1100 = vmatprep.subr.bf16.mxu0 0
        %1101 = vmatpush1.bf16.msra.mxu0 %v1076
        %1102 = vmatprep.subr.bf16.mxu0 0
        %1103 = vmatpush1.bf16.msra.mxu0 %v1075
        %1104 = vmatprep.subr.bf16.mxu0 0
        %1105 = vmatpush1.bf16.msra.mxu0 %v1074
        %1106 = vmatprep.subr.bf16.mxu0 0
        %1107 = vmatpush2.bf16.msra.mxu0 0
        %1108 = vmatprep.subr.bf16.mxu0 0
        %1109 = vmatpush2.bf16.msra.mxu0 0
        %1110 = vmatprep.subr.bf16.mxu0 0
        %1111 = vmatpush2.bf16.msra.mxu0 0
        %1112 = vmatprep.subr.bf16.mxu0 0
        %1113 = vmatpush2.bf16.msra.mxu0 0
        %1114 = vmatprep.subr.bf16.mxu0 0
        %1115 = vmatpush2.bf16.msra.mxu0 0
        %1116 = vmatprep.subr.bf16.mxu0 0
        %1117 = vmatpush2.bf16.msra.mxu0 0
        %1118 = vmatprep.subr.bf16.mxu0 0
        %1119 = vmatpush2.bf16.msra.mxu0 0
        %1120 = vmatprep.subr.bf16.mxu0 0
        %1121 = vmatpush2.bf16.msra.mxu0 0
        %1122 = vmatprep.mubr.bf16.mxu0 0
        %1123 = vmatmul.mubr.bf16.gmra.mxu0 %v1040
        %v1124 = vpop.f32.mrf.mxu0
        %v1125 = vadd.f32 0.0, %v1124
        %v1126 = vpop.f32.mrf.mxu0
        %v1127 = vpop.f32.mrf.mxu0
        %v1128 = vadd.f32 0.0, %v1127
        %v1129 = vpop.f32.mrf.mxu0
        %1130 = vdwg.mxu0
        %v1131 = vadd.f32 %v1015, %v1125
        %v1132 = vadd.f32 %v1016, %v1128
        %v1133 = vmax.f32 %v1131, 0.0
        %v1134 = vmax.f32 %v1132, 0.0
        %v1135 = vpack.c.bf16 %v1134, %v1133
        %v1137 = vunpack.c.l.b16 %v1135
        %v1138 = vunpack.c.h.b16 %v1135
        %v1139 = vpack.c.b16 %v1137, %v1137
        %v1140 = vpack.c.b16 %v1138, %v1138
        %v1142 = vshrl.u32 %v1139, 16
        %v1144 = vrot.slane %v1142, 7
        %v1145 = vshll.u32 %v1139, 16
        %v1147 = vor.u32 %v1144, %v1145
        %v1148 = vrot.slane %v1144, 4
        %v1150 = vshrl.u32 %v1140, 16
        %v1152 = vrot.slane %v1150, 7
        %v1153 = vshll.u32 %v1140, 16
        %v1155 = vor.u32 %v1152, %v1153
        %v1156 = vsel %vm412, %v1148, %v1155
        %v1157 = vrot.slane %v1152, 4
        %v1161 = vsel %vm755, %v1147, %v885
        %1162 = vst [vmem:[#allocation3] sm:$0xf] %v1161
        %1163 = vst [vmem:[#allocation3 + $0x4] sm:$0xf] %v1156
        %v1164 = vld [vmem:[#allocation3 + $0x8] sm:$0x1]
        %v1165 = vsel %vm395, %v1157, %v1164
        %1166 = vst [vmem:[#allocation3 + $0x8] sm:$0x1] %v1165
        %v1167 = vld [vmem:[%s6] sm:$0x1]
        %v1168 = vld [vmem:[#allocation3] sm:$0xf]
        %v1169 = vld [vmem:[#allocation3 + $0x4] sm:$0xf]
        %v1170 = vld [vmem:[#allocation10] sm:$0xf]
        %v1171 = vld [vmem:[#allocation10 + $0x4] sm:$0xf]
        %v1172 = vld [vmem:[#allocation10 + $0x8] sm:$0xf]
        %v1173 = vld [vmem:[#allocation10 + $0xc] sm:$0xf]
        %v1174 = vld [vmem:[#allocation10 + $0x10] sm:$0xf]
        %v1175 = vld [vmem:[#allocation10 + $0x14] sm:$0xf]
        %v1176 = vld [vmem:[#allocation10 + $0x18] sm:$0xf]
        %v1177 = vld [vmem:[#allocation10 + $0x1c] sm:$0xf]
        %v1178 = vld [vmem:[#allocation10 + $0x20] sm:$0xf]
        %v1179 = vld [vmem:[#allocation10 + $0x24] sm:$0xf]
        %v1180 = vld [vmem:[#allocation10 + $0x28] sm:$0xf]
        %v1181 = vld [vmem:[#allocation10 + $0x2c] sm:$0xf]
        %v1182 = vld [vmem:[#allocation10 + $0x30] sm:$0xf]
        %v1183 = vld [vmem:[#allocation10 + $0x34] sm:$0xf]
        %v1184 = vld [vmem:[#allocation10 + $0x38] sm:$0xf]
        %v1185 = vld [vmem:[#allocation10 + $0x3c] sm:$0xf]
        %v1188 = vunpack.c.l.b16 %v1168
        %v1189 = vunpack.c.l.b16 %v1169
        %v1190 = vpack.c.b16 %v1189, %v1188
        %v1208 = vunpack.c.l.b16 %v1170
        %v1209 = vunpack.c.l.b16 %v1171
        %v1210 = vunpack.c.l.b16 %v1172
        %v1211 = vunpack.c.l.b16 %v1173
        %v1212 = vunpack.c.l.b16 %v1174
        %v1213 = vunpack.c.l.b16 %v1175
        %v1214 = vunpack.c.l.b16 %v1176
        %v1215 = vunpack.c.l.b16 %v1177
        %v1216 = vunpack.c.l.b16 %v1178
        %v1217 = vunpack.c.l.b16 %v1179
        %v1218 = vunpack.c.l.b16 %v1180
        %v1219 = vunpack.c.l.b16 %v1181
        %v1220 = vunpack.c.l.b16 %v1182
        %v1221 = vunpack.c.l.b16 %v1183
        %v1222 = vunpack.c.l.b16 %v1184
        %v1223 = vunpack.c.l.b16 %v1185
        %v1224 = vpack.c.b16 %v1209, %v1208
        %v1225 = vpack.c.b16 %v1211, %v1210
        %v1226 = vpack.c.b16 %v1213, %v1212
        %v1227 = vpack.c.b16 %v1215, %v1214
        %v1228 = vpack.c.b16 %v1217, %v1216
        %v1229 = vpack.c.b16 %v1219, %v1218
        %v1230 = vpack.c.b16 %v1221, %v1220
        %v1231 = vpack.c.b16 %v1223, %v1222
        %1240 = vmatprep.subr.bf16.mxu0 0
        %1241 = vmatpush1.bf16.msra.mxu0 %v1231
        %1242 = vmatprep.subr.bf16.mxu0 0
        %1243 = vmatpush1.bf16.msra.mxu0 %v1230
        %1244 = vmatprep.subr.bf16.mxu0 0
        %1245 = vmatpush1.bf16.msra.mxu0 %v1229
        %1246 = vmatprep.subr.bf16.mxu0 0
        %1247 = vmatpush1.bf16.msra.mxu0 %v1228
        %1248 = vmatprep.subr.bf16.mxu0 0
        %1249 = vmatpush1.bf16.msra.mxu0 %v1227
        %1250 = vmatprep.subr.bf16.mxu0 0
        %1251 = vmatpush1.bf16.msra.mxu0 %v1226
        %1252 = vmatprep.subr.bf16.mxu0 0
        %1253 = vmatpush1.bf16.msra.mxu0 %v1225
        %1254 = vmatprep.subr.bf16.mxu0 0
        %1255 = vmatpush1.bf16.msra.mxu0 %v1224
        %1256 = vmatprep.subr.bf16.mxu0 0
        %1257 = vmatpush2.bf16.msra.mxu0 0
        %1258 = vmatprep.subr.bf16.mxu0 0
        %1259 = vmatpush2.bf16.msra.mxu0 0
        %1260 = vmatprep.subr.bf16.mxu0 0
        %1261 = vmatpush2.bf16.msra.mxu0 0
        %1262 = vmatprep.subr.bf16.mxu0 0
        %1263 = vmatpush2.bf16.msra.mxu0 0
        %1264 = vmatprep.subr.bf16.mxu0 0
        %1265 = vmatpush2.bf16.msra.mxu0 0
        %1266 = vmatprep.subr.bf16.mxu0 0
        %1267 = vmatpush2.bf16.msra.mxu0 0
        %1268 = vmatprep.subr.bf16.mxu0 0
        %1269 = vmatpush2.bf16.msra.mxu0 0
        %1270 = vmatprep.subr.bf16.mxu0 0
        %1271 = vmatpush2.bf16.msra.mxu0 0
        %1272 = vmatprep.mubr.bf16.mxu0 0
        %1273 = vmatmul.mubr.bf16.gmra.mxu0 %v1190
        %v1274 = vpop.f32.mrf.mxu0
        %v1275 = vadd.f32 0.0, %v1274
        %v1276 = vpop.f32.mrf.mxu0
        %v1277 = vpop.f32.mrf.mxu0
        %v1278 = vadd.f32 0.0, %v1277
        %v1279 = vpop.f32.mrf.mxu0
        %1280 = vdwg.mxu0
        %v1282 = vlaneseq
        %v1283 = vshrl.u32 %v1282, 7
        %v1284 = vsub.s32 0, %v1283
        %v1285 = vrot.slane %v1167, %v1284
        %v1287 = vadd.f32 %v1285, %v1275
        %v1288 = vadd.f32 %v1285, %v1278
        %v1289 = vld [vmem:[#allocation3] sm:$0xf]
        %v1290 = vld [vmem:[#allocation3 + $0x4] sm:$0xf]
        %v1291 = vld [vmem:[#allocation3 + $0x8] sm:$0x1]
        %s1292 = scalar_lea.vmem [#allocation10], 64
        %v1293 = vld [vmem:[%s1292] sm:$0xf]
        %v1294 = vld [vmem:[%s1292 + $0x4] sm:$0xf]
        %v1295 = vld [vmem:[%s1292 + $0x8] sm:$0xf]
        %v1296 = vld [vmem:[%s1292 + $0xc] sm:$0xf]
        %v1297 = vld [vmem:[%s1292 + $0x10] sm:$0xf]
        %v1298 = vld [vmem:[%s1292 + $0x14] sm:$0xf]
        %v1299 = vld [vmem:[%s1292 + $0x18] sm:$0xf]
        %v1300 = vld [vmem:[%s1292 + $0x1c] sm:$0xf]
        %v1301 = vld [vmem:[%s1292 + $0x20] sm:$0xf]
        %v1302 = vld [vmem:[%s1292 + $0x24] sm:$0xf]
        %v1303 = vld [vmem:[%s1292 + $0x28] sm:$0xf]
        %v1304 = vld [vmem:[%s1292 + $0x2c] sm:$0xf]
        %v1305 = vld [vmem:[%s1292 + $0x30] sm:$0xf]
        %v1306 = vld [vmem:[%s1292 + $0x34] sm:$0xf]
        %v1307 = vld [vmem:[%s1292 + $0x38] sm:$0xf]
        %v1308 = vld [vmem:[%s1292 + $0x3c] sm:$0xf]
        %v1312 = vunpack.c.l.b16 %v1289
        %v1313 = vunpack.c.l.b16 %v1290
        %v1314 = vunpack.c.l.b16 %v1291
        %v1315 = vpack.c.b16 %v1313, %v1312
        %v1316 = vpack.c.b16 %v1314, %v1314
        %v1318 = vshrl.u32 %v1315, 16
        %v1320 = vshll.u32 %v1315, 16
        %v1322 = vrot.slane %v1320, 1
        %v1323 = vor.u32 %v1318, %v1322
        %v1325 = vshll.u32 %v1316, 16
        %v1327 = vrot.slane %v1325, 1
        %v1328 = vsel %vm556, %v1323, %v1327
        %v1346 = vunpack.c.l.b16 %v1293
        %v1347 = vunpack.c.l.b16 %v1294
        %v1348 = vunpack.c.l.b16 %v1295
        %v1349 = vunpack.c.l.b16 %v1296
        %v1350 = vunpack.c.l.b16 %v1297
        %v1351 = vunpack.c.l.b16 %v1298
        %v1352 = vunpack.c.l.b16 %v1299
        %v1353 = vunpack.c.l.b16 %v1300
        %v1354 = vunpack.c.l.b16 %v1301
        %v1355 = vunpack.c.l.b16 %v1302
        %v1356 = vunpack.c.l.b16 %v1303
        %v1357 = vunpack.c.l.b16 %v1304
        %v1358 = vunpack.c.l.b16 %v1305
        %v1359 = vunpack.c.l.b16 %v1306
        %v1360 = vunpack.c.l.b16 %v1307
        %v1361 = vunpack.c.l.b16 %v1308
        %v1362 = vpack.c.b16 %v1347, %v1346
        %v1363 = vpack.c.b16 %v1349, %v1348
        %v1364 = vpack.c.b16 %v1351, %v1350
        %v1365 = vpack.c.b16 %v1353, %v1352
        %v1366 = vpack.c.b16 %v1355, %v1354
        %v1367 = vpack.c.b16 %v1357, %v1356
        %v1368 = vpack.c.b16 %v1359, %v1358
        %v1369 = vpack.c.b16 %v1361, %v1360
        %1378 = vmatprep.subr.bf16.mxu0 0
        %1379 = vmatpush1.bf16.msra.mxu0 %v1369
        %1380 = vmatprep.subr.bf16.mxu0 0
        %1381 = vmatpush1.bf16.msra.mxu0 %v1368
        %1382 = vmatprep.subr.bf16.mxu0 0
        %1383 = vmatpush1.bf16.msra.mxu0 %v1367
        %1384 = vmatprep.subr.bf16.mxu0 0
        %1385 = vmatpush1.bf16.msra.mxu0 %v1366
        %1386 = vmatprep.subr.bf16.mxu0 0
        %1387 = vmatpush1.bf16.msra.mxu0 %v1365
        %1388 = vmatprep.subr.bf16.mxu0 0
        %1389 = vmatpush1.bf16.msra.mxu0 %v1364
        %1390 = vmatprep.subr.bf16.mxu0 0
        %1391 = vmatpush1.bf16.msra.mxu0 %v1363
        %1392 = vmatprep.subr.bf16.mxu0 0
        %1393 = vmatpush1.bf16.msra.mxu0 %v1362
        %1394 = vmatprep.subr.bf16.mxu0 0
        %1395 = vmatpush2.bf16.msra.mxu0 0
        %1396 = vmatprep.subr.bf16.mxu0 0
        %1397 = vmatpush2.bf16.msra.mxu0 0
        %1398 = vmatprep.subr.bf16.mxu0 0
        %1399 = vmatpush2.bf16.msra.mxu0 0
        %1400 = vmatprep.subr.bf16.mxu0 0
        %1401 = vmatpush2.bf16.msra.mxu0 0
        %1402 = vmatprep.subr.bf16.mxu0 0
        %1403 = vmatpush2.bf16.msra.mxu0 0
        %1404 = vmatprep.subr.bf16.mxu0 0
        %1405 = vmatpush2.bf16.msra.mxu0 0
        %1406 = vmatprep.subr.bf16.mxu0 0
        %1407 = vmatpush2.bf16.msra.mxu0 0
        %1408 = vmatprep.subr.bf16.mxu0 0
        %1409 = vmatpush2.bf16.msra.mxu0 0
        %1410 = vmatprep.mubr.bf16.mxu0 0
        %1411 = vmatmul.mubr.bf16.gmra.mxu0 %v1328
        %v1412 = vpop.f32.mrf.mxu0
        %v1413 = vadd.f32 0.0, %v1412
        %v1414 = vpop.f32.mrf.mxu0
        %v1415 = vpop.f32.mrf.mxu0
        %v1416 = vadd.f32 0.0, %v1415
        %v1417 = vpop.f32.mrf.mxu0
        %1418 = vdwg.mxu0
        %v1419 = vadd.f32 %v1287, %v1413
        %v1420 = vadd.f32 %v1288, %v1416
        %v1421 = vld [vmem:[#allocation3] sm:$0xe]
        %s1422 = scalar_lea.vmem [#allocation10], 128
        %v1423 = vld [vmem:[%s1422] sm:$0xf]
        %v1424 = vld [vmem:[%s1422 + $0x4] sm:$0xf]
        %v1425 = vld [vmem:[%s1422 + $0x8] sm:$0xf]
        %v1426 = vld [vmem:[%s1422 + $0xc] sm:$0xf]
        %v1427 = vld [vmem:[%s1422 + $0x10] sm:$0xf]
        %v1428 = vld [vmem:[%s1422 + $0x14] sm:$0xf]
        %v1429 = vld [vmem:[%s1422 + $0x18] sm:$0xf]
        %v1430 = vld [vmem:[%s1422 + $0x1c] sm:$0xf]
        %v1431 = vld [vmem:[%s1422 + $0x20] sm:$0xf]
        %v1432 = vld [vmem:[%s1422 + $0x24] sm:$0xf]
        %v1433 = vld [vmem:[%s1422 + $0x28] sm:$0xf]
        %v1434 = vld [vmem:[%s1422 + $0x2c] sm:$0xf]
        %v1435 = vld [vmem:[%s1422 + $0x30] sm:$0xf]
        %v1436 = vld [vmem:[%s1422 + $0x34] sm:$0xf]
        %v1437 = vld [vmem:[%s1422 + $0x38] sm:$0xf]
        %v1438 = vld [vmem:[%s1422 + $0x3c] sm:$0xf]
        %v1440 = vunpack.c.l.b16 %v1421
        %v1441 = vpack.c.b16 %v1313, %v1440
        %v1442 = vrot.slane %v1441, 1
        %v1443 = vrot.slane %v1316, 1
        %v1444 = vsel %vm652, %v1442, %v1443
        %v1462 = vunpack.c.l.b16 %v1423
        %v1463 = vunpack.c.l.b16 %v1424
        %v1464 = vunpack.c.l.b16 %v1425
        %v1465 = vunpack.c.l.b16 %v1426
        %v1466 = vunpack.c.l.b16 %v1427
        %v1467 = vunpack.c.l.b16 %v1428
        %v1468 = vunpack.c.l.b16 %v1429
        %v1469 = vunpack.c.l.b16 %v1430
        %v1470 = vunpack.c.l.b16 %v1431
        %v1471 = vunpack.c.l.b16 %v1432
        %v1472 = vunpack.c.l.b16 %v1433
        %v1473 = vunpack.c.l.b16 %v1434
        %v1474 = vunpack.c.l.b16 %v1435
        %v1475 = vunpack.c.l.b16 %v1436
        %v1476 = vunpack.c.l.b16 %v1437
        %v1477 = vunpack.c.l.b16 %v1438
        %v1478 = vpack.c.b16 %v1463, %v1462
        %v1479 = vpack.c.b16 %v1465, %v1464
        %v1480 = vpack.c.b16 %v1467, %v1466
        %v1481 = vpack.c.b16 %v1469, %v1468
        %v1482 = vpack.c.b16 %v1471, %v1470
        %v1483 = vpack.c.b16 %v1473, %v1472
        %v1484 = vpack.c.b16 %v1475, %v1474
        %v1485 = vpack.c.b16 %v1477, %v1476
        %1494 = vmatprep.subr.bf16.mxu0 0
        %1495 = vmatpush1.bf16.msra.mxu0 %v1485
        %1496 = vmatprep.subr.bf16.mxu0 0
        %1497 = vmatpush1.bf16.msra.mxu0 %v1484
        %1498 = vmatprep.subr.bf16.mxu0 0
        %1499 = vmatpush1.bf16.msra.mxu0 %v1483
        %1500 = vmatprep.subr.bf16.mxu0 0
        %1501 = vmatpush1.bf16.msra.mxu0 %v1482
        %1502 = vmatprep.subr.bf16.mxu0 0
        %1503 = vmatpush1.bf16.msra.mxu0 %v1481
        %1504 = vmatprep.subr.bf16.mxu0 0
        %1505 = vmatpush1.bf16.msra.mxu0 %v1480
        %1506 = vmatprep.subr.bf16.mxu0 0
        %1507 = vmatpush1.bf16.msra.mxu0 %v1479
        %1508 = vmatprep.subr.bf16.mxu0 0
        %1509 = vmatpush1.bf16.msra.mxu0 %v1478
        %1510 = vmatprep.subr.bf16.mxu0 0
        %1511 = vmatpush2.bf16.msra.mxu0 0
        %1512 = vmatprep.subr.bf16.mxu0 0
        %1513 = vmatpush2.bf16.msra.mxu0 0
        %1514 = vmatprep.subr.bf16.mxu0 0
        %1515 = vmatpush2.bf16.msra.mxu0 0
        %1516 = vmatprep.subr.bf16.mxu0 0
        %1517 = vmatpush2.bf16.msra.mxu0 0
        %1518 = vmatprep.subr.bf16.mxu0 0
        %1519 = vmatpush2.bf16.msra.mxu0 0
        %1520 = vmatprep.subr.bf16.mxu0 0
        %1521 = vmatpush2.bf16.msra.mxu0 0
        %1522 = vmatprep.subr.bf16.mxu0 0
        %1523 = vmatpush2.bf16.msra.mxu0 0
        %1524 = vmatprep.subr.bf16.mxu0 0
        %1525 = vmatpush2.bf16.msra.mxu0 0
        %1526 = vmatprep.mubr.bf16.mxu0 0
        %1527 = vmatmul.mubr.bf16.gmra.mxu0 %v1444
        %v1528 = vpop.f32.mrf.mxu0
        %v1529 = vadd.f32 0.0, %v1528
        %v1530 = vpop.f32.mrf.mxu0
        %v1531 = vpop.f32.mrf.mxu0
        %v1532 = vadd.f32 0.0, %v1531
        %v1533 = vpop.f32.mrf.mxu0
        %1534 = vdwg.mxu0
        %v1535 = vadd.f32 %v1419, %v1529
        %v1536 = vadd.f32 %v1420, %v1532
        %v1537 = vld [vmem:[#allocation2] sm:$0xf]
        %v1538 = vld [vmem:[#allocation2 + $0x4] sm:$0xf]
        %v1539 = vld [vmem:[#allocation2 + $0x8] sm:$0x1]
        %v1540 = vld [vmem:[#allocation12] sm:$0xf]
        %v1541 = vld [vmem:[#allocation12 + $0x4] sm:$0xf]
        %v1542 = vld [vmem:[#allocation12 + $0x8] sm:$0xf]
        %v1543 = vld [vmem:[#allocation12 + $0xc] sm:$0xf]
        %v1544 = vld [vmem:[#allocation12 + $0x10] sm:$0xf]
        %v1545 = vld [vmem:[#allocation12 + $0x14] sm:$0xf]
        %v1546 = vld [vmem:[#allocation12 + $0x18] sm:$0xf]
        %v1547 = vld [vmem:[#allocation12 + $0x1c] sm:$0xf]
        %v1551 = vunpack.c.l.b16 %v1537
        %v1552 = vunpack.c.l.b16 %v1538
        %v1553 = vunpack.c.l.b16 %v1539
        %v1554 = vpack.c.b16 %v1552, %v1551
        %v1555 = vpack.c.b16 %v1553, %v1553
        %v1557 = vshrl.u32 %v1554, 16
        %v1559 = vshll.u32 %v1554, 16
        %v1561 = vrot.slane %v1559, 1
        %v1562 = vor.u32 %v1557, %v1561
        %v1564 = vshll.u32 %v1555, 16
        %v1566 = vrot.slane %v1564, 1
        %v1567 = vsel %vm556, %v1562, %v1566
        %v1576 = vunpack.c.l.b16 %v1540
        %v1577 = vunpack.c.l.b16 %v1541
        %v1578 = vunpack.c.l.b16 %v1542
        %v1579 = vunpack.c.l.b16 %v1543
        %v1580 = vunpack.c.l.b16 %v1544
        %v1581 = vunpack.c.l.b16 %v1545
        %v1582 = vunpack.c.l.b16 %v1546
        %v1583 = vunpack.c.l.b16 %v1547
        %v1584 = vpack.c.b16 %v1577, %v1576
        %v1585 = vpack.c.b16 %v1579, %v1578
        %v1586 = vpack.c.b16 %v1581, %v1580
        %v1587 = vpack.c.b16 %v1583, %v1582
        %v1593 = vsel %vm483, %v1567, 0
        %1595 = vmatprep.subr.bf16.mxu0 0
        %1596 = vmatpush1.bf16.msra.mxu0 0
        %1597 = vmatprep.subr.bf16.mxu0 0
        %1598 = vmatpush1.bf16.msra.mxu0 0
        %1599 = vmatprep.subr.bf16.mxu0 0
        %1600 = vmatpush1.bf16.msra.mxu0 0
        %1601 = vmatprep.subr.bf16.mxu0 0
        %1602 = vmatpush1.bf16.msra.mxu0 0
        %1603 = vmatprep.subr.bf16.mxu0 0
        %1604 = vmatpush1.bf16.msra.mxu0 %v1587
        %1605 = vmatprep.subr.bf16.mxu0 0
        %1606 = vmatpush1.bf16.msra.mxu0 %v1586
        %1607 = vmatprep.subr.bf16.mxu0 0
        %1608 = vmatpush1.bf16.msra.mxu0 %v1585
        %1609 = vmatprep.subr.bf16.mxu0 0
        %1610 = vmatpush1.bf16.msra.mxu0 %v1584
        %1611 = vmatprep.subr.bf16.mxu0 0
        %1612 = vmatpush2.bf16.msra.mxu0 0
        %1613 = vmatprep.subr.bf16.mxu0 0
        %1614 = vmatpush2.bf16.msra.mxu0 0
        %1615 = vmatprep.subr.bf16.mxu0 0
        %1616 = vmatpush2.bf16.msra.mxu0 0
        %1617 = vmatprep.subr.bf16.mxu0 0
        %1618 = vmatpush2.bf16.msra.mxu0 0
        %1619 = vmatprep.subr.bf16.mxu0 0
        %1620 = vmatpush2.bf16.msra.mxu0 0
        %1621 = vmatprep.subr.bf16.mxu0 0
        %1622 = vmatpush2.bf16.msra.mxu0 0
        %1623 = vmatprep.subr.bf16.mxu0 0
        %1624 = vmatpush2.bf16.msra.mxu0 0
        %1625 = vmatprep.subr.bf16.mxu0 0
        %1626 = vmatpush2.bf16.msra.mxu0 0
        %1627 = vmatprep.mubr.bf16.mxu0 0
        %1628 = vmatmul.mubr.bf16.gmra.mxu0 %v1593
        %v1629 = vpop.f32.mrf.mxu0
        %v1630 = vadd.f32 0.0, %v1629
        %v1631 = vpop.f32.mrf.mxu0
        %v1632 = vpop.f32.mrf.mxu0
        %v1633 = vadd.f32 0.0, %v1632
        %v1634 = vpop.f32.mrf.mxu0
        %1635 = vdwg.mxu0
        %v1636 = vadd.f32 %v1535, %v1630
        %v1637 = vadd.f32 %v1536, %v1633
        %v1638 = vmax.f32 %v1636, 0.0
        %v1639 = vmax.f32 %v1637, 0.0
        %1640 = vst [vmem:[%s381] sm:$0xff] %v1638
        %1641 = vst [vmem:[%s381 + $0x8] sm:$0xff] %v1639
        %s1642 = sand.u32 %s208, 1
        %s1643 = scalar_lea.sflag [#allocation6], %s1642
        %s1644 = sand.u32 %s208, 1
        %s1645 = smul.addr %s1644, 16
        %s1646 = scalar_lea.vmem [#allocation13], %s1645
        // Predicated region
        $region73: #{tpu_custom_call.1} parent=51 // pred_check
          %p1647 = pneg %p218
        $region74: #{tpu_custom_call.1} parent=51 // pred_check_branch
          %1649 = sbr.rel (%p1647) target = $region76
        $region75: #{tpu_custom_call.1} parent=51 // pred_region
          %s1651 = ssub.s32 256, 256
          %1652 = vsyncadd %s1643, %s1651
          %s1653 = smul.addr %s27, 2
          %s1654 = smul.addr %s1653, 128
          %s1655 = scalar_lea.hbm %s8, %s1654
          %s1656 = sshll.u32 %s1646, 4
          %s1657 = int_to_ptr.vmem [resolvable:$true] %s1656
          %1662 = dma.vmem_to_hbm [thread:$0]  %s1657, 256, %s1655, %s1643, 128, 128, 8
        $region76: #{tpu_custom_call.1} parent=51 // pred_fallthru
          _
      $region52: #{tpu_custom_call.1} parent=5 // pred_fallthru
        _
      %p1663 = scmp.le.s32.totalorder 2, %s22
      // Predicated region
      $region77: #{tpu_custom_call.1} parent=5 // pred_check
        %p1664 = pneg %p1663
      $region78: #{tpu_custom_call.1} parent=5 // pred_check_branch
        %1666 = sbr.rel (%p1664) target = $region80
      $region79: #{tpu_custom_call.1} parent=5 // pred_region
        %s1667 = ssub.s32 %s22, 2
        // Predicated region
        $region81: #{tpu_custom_call.1} parent=79 // pred_check
          %p1668 = pneg %p224
        $region82: #{tpu_custom_call.1} parent=79 // pred_check_branch
          %1670 = sbr.rel (%p1668) target = $region84
        $region83: #{tpu_custom_call.1} parent=79 // pred_region
          %s1671 = sand.u32 %s209, 1
          %s1672 = scalar_lea.sflag [#allocation6], %s1671
          %s1673 = sand.u32 %s209, 1
          %s1674 = smul.addr %s1673, 16
          %s1675 = scalar_lea.vmem [#allocation13], %s1674
          %1676 = dma.done %s1672, 256
        $region84: #{tpu_custom_call.1} parent=79 // pred_fallthru
          _
      $region80: #{tpu_custom_call.1} parent=5 // pred_fallthru
        _
    $region6: #{tpu_custom_call.1} parent=1 // loop_footer
      %s26 = sadd.s32 1, %s22
    $region7: #{tpu_custom_call.1} parent=1 // loop_footer_branch
      %21 = sbr.rel target = $region3
    $region8: #{tpu_custom_call.1} parent=1 // loop_exit
      _
    %1677 = vsyncpa [#allocation5], 1
    %s1678 = scalar_lea.sflag [#allocation5], 1
    %1679 = vsyncpa %s1678, 1
    %1680 = vsyncpa [#allocation8], 1
    %1681 = vsyncpa [#allocation11], 1
    %1682 = vsyncpa [#allocation6], 1
    %s1683 = scalar_lea.sflag [#allocation6], 1
    %1684 = vsyncpa %s1683, 1

</llo_original>
